<compile_context>
chip_gen: v7x
topology: tpu7x:2x2x1
jax: 0.10.0
libtpu: 0.0.40
codegen_flags: <defaults>
</compile_context>

<pallas_src>
import numpy as np
import jax
import jax.numpy as jnp
from jax import lax
from jax.experimental import pallas as pl
from jax.experimental.pallas import tpu as pltpu

# ---- "opt" configuration (mirrors barfplanar defaults, at small size) -------
L_2D = 8                              # opt.arch.posenc.L_2D
ENC_DIM = 4 * L_2D                    # 32  (sin/cos * 2 coords * L freqs)
POSENC_DIM = 2 + ENC_DIM              # 34
HIDDEN = 32                           # small hidden width
OUT = 3                               # rgb
SKIP = (2,)                           # opt.arch.skip
BARF_C2F = (0.1, 0.5)                 # opt.barf_c2f
PROGRESS = 0.3                        # self.progress.data
# util.get_layer_dims(opt.arch.layers) equivalent (layer-0 k_in replaced,
# skip-layer k_in widened):
LAYER_DIMS = [(POSENC_DIM, HIDDEN),
              (HIDDEN, HIDDEN),
              (HIDDEN + POSENC_DIM, HIDDEN),    # li=2 in SKIP
              (HIDDEN, HIDDEN),
              (HIDDEN, OUT)]

# Operand packing stacks three HIDDENxHIDDEN transposed matrices and packs the
# frequency/phase/coord/bias column vectors into one (32, 11) array; this
# relies on ENC_DIM == HIDDEN.
assert ENC_DIM == HIDDEN


# ------------------------------ Pallas kernel --------------------------------
def mlp_kernel(coord_ref, wsq_ref, w2t_ref, w4t_ref, cvec_ref, b4_ref, o_ref):
    # coord_ref : (2, tm)      f32   raw coords, lane-dense
    # wsq_ref   : (3, 32, 32)  bf16  [W0_enc^T * c2f, W1^T, W3^T]
    # w2t_ref   : (32, 64)     bf16  fused skip weight: [W2_feat; W2_enc*c2f]^T
    # w4t_ref   : (3, 32)      bf16  output layer W4^T
    # cvec_ref  : (32, 11)     f32   columns: [Ax, Ay, phi, w0c_x, w0c_y,
    #                                          w2c_x, w2c_y, b0, b1, b2, b3]
    # b4_ref    : (3, 1)       f32
    # o_ref     : (3, tm)      f32   rgb, lane-dense orientation
    cx = coord_ref[0:1, :]                              # (1, tm) f32
    cy = coord_ref[1:2, :]                              # (1, tm)

    cvec = cvec_ref[...]                                # (32, 11) f32
    Ax, Ay, phi = cvec[:, 0:1], cvec[:, 1:2], cvec[:, 2:3]
    w0cx, w0cy = cvec[:, 3:4], cvec[:, 4:5]
    w2cx, w2cy = cvec[:, 5:6], cvec[:, 6:7]
    b0, b1, b2, b3 = cvec[:, 7:8], cvec[:, 8:9], cvec[:, 9:10], cvec[:, 10:11]

    # ---- fused positional encoding (transposed: (32, tm), VPU + EUP) --------
    # enc rows = [sin(x f_k), cos(x f_k), sin(y f_k), cos(y f_k)] with
    # cos(t) = sin(t + pi/2) baked into the phase-offset column phi.
    # The BARF c2f per-frequency weight is folded into the enc-side weight
    # rows (wsq[0] and the enc half of w2t) by the wrapper.
    phase = Ax * cx + Ay * cy + phi                     # (32, tm) f32
    enc = jnp.sin(phase)
    enc_b = enc.astype(jnp.bfloat16)

    # raw-coord contributions to layer 0 and the skip layer (broadcast VPU)
    c0 = w0cx * cx + w0cy * cy                          # (32, tm) f32
    c2 = w2cx * cx + w2cy * cy                          # (32, tm) f32

    def dotT(w, x):                                     # W^T(32,K) @ x(K,tm)
        return jnp.dot(w, x, preferred_element_type=jnp.float32)

    # ---- MLP: bf16 matmul inputs, f32 accumulation, (hidden, tm) layout -----
    # layer 0
    f = dotT(wsq_ref[0], enc_b) + c0 + b0
    f = jnp.maximum(f, 0.0)
    # layer 1
    f = dotT(wsq_ref[1], f.astype(jnp.bfloat16)) + b1
    f = jnp.maximum(f, 0.0)
    # layer 2 (skip), fused K=64: cat([feat; enc]) @ [W2_feat; W2_enc]^T
    x2 = jnp.concatenate([f.astype(jnp.bfloat16), enc_b], axis=0)  # (64, tm)
    f = dotT(w2t_ref[...], x2) + c2 + b2
    f = jnp.maximum(f, 0.0)
    # layer 3
    f = dotT(wsq_ref[2], f.astype(jnp.bfloat16)) + b3
    f = jnp.maximum(f, 0.0)
    # layer 4 (output): (3, tm) lane-dense, full-128-lane store
    logits = dotT(w4t_ref[...], f.astype(jnp.bfloat16)) + b4_ref[...]
    o_ref[...] = jax.nn.sigmoid(logits)


# ------------------------------ wrappers --------------------------------------
def prepare_kernel_params(params, progress=PROGRESS, c2f=BARF_C2F, L=L_2D):
    """Pack / pre-process the Linear weights for the fused, transposed kernel.

    Folds the BARF coarse-to-fine per-frequency weight into the enc-side weight
    rows, splits the layer-0 / skip matrices into coord columns (kept f32 on
    the VPU path) and enc rows (bf16 on the MXU path), pre-transposes every
    weight for the (hidden, tm) layout, fuses the skip layer into one K=64
    weight, and builds the sin-phase vectors for the in-kernel posenc.
    """
    (w0, b0), (w1, b1), (w2, b2), (w3, b3), (w4, b4) = params

    # c2f per-frequency weight (same math as positional_encoding)
    start, end = c2f
    alpha = (progress - start) / (end - start) * L
    k = np.arange(L, dtype=np.float32)
    cw = (1.0 - np.cos(np.clip(alpha - k, 0.0, 1.0) * np.pi)) / 2.0   # [L]
    col_scale = np.tile(cw, 4).astype(np.float32)                     # [4L]

    # split layer 0 and the skip part of layer 2 into coord rows / enc rows
    w0c, w0e = w0[:2], w0[2:] * col_scale[:, None]          # (2,32), (32,32)
    w2f = w2[:HIDDEN]                                        # feat rows (32,32)
    w2s = w2[HIDDEN:]                                        # [coord(2), enc(4L)]
    w2sc, w2se = w2s[:2], w2s[2:] * col_scale[:, None]       # (2,32), (32,32)

    # phase = Ax*x + Ay*y + phi ; enc = sin(phase)
    # enc row ordering = [sin_x(L), cos_x(L), sin_y(L), cos_y(L)]
    freq = (2.0 ** np.arange(L, dtype=np.float32)) * np.pi
    Ax = np.zeros((4 * L,), np.float32)
    Ay = np.zeros((4 * L,), np.float32)
    Ax[0 * L:1 * L] = freq
    Ax[1 * L:2 * L] = freq
    Ay[2 * L:3 * L] = freq
    Ay[3 * L:4 * L] = freq
    phi = np.zeros((4 * L,), np.float32)
    phi[1 * L:2 * L] = np.pi / 2.0           # cos(t) = sin(t + pi/2)
    phi[3 * L:4 * L] = np.pi / 2.0

    # transposed weights for the (hidden, tm) layout
    wsq = jnp.stack([w0e.T, w1.T, w3.T]).astype(jnp.bfloat16)      # (3,32,32)
    w2t = jnp.concatenate([w2f, w2se], axis=0).T.astype(jnp.bfloat16)  # (32,64)
    w4t = jnp.asarray(w4).T.astype(jnp.bfloat16)                   # (3,32)
    b4c = jnp.asarray(b4).reshape(OUT, 1).astype(jnp.float32)      # (3,1)

    # packed f32 column vectors (one per lane-column): freq, phase, coord, bias
    cvec = jnp.stack([jnp.asarray(Ax), jnp.asarray(Ay), jnp.asarray(phi),
                      w0c[0], w0c[1], w2sc[0], w2sc[1],
                      b0[0], b1[0], b2[0], b3[0]], axis=1).astype(jnp.float32)
    return wsq, w2t, w4t, cvec, b4c


def neural_image_mlp(coord_flat, kparams, *, tm_cap=2048):
    """coord_flat: [M, 2] f32 -> rgb [M, 3] f32 (posenc + MLP fused in-kernel)."""
    wsq, w2t, w4t, cvec, b4c = kparams
    M = coord_flat.shape[0]

    # Tile: multiple of 128 (lane-dense), capped at tm_cap, clamped so there
    # are >= 4 grid steps when M allows it (>= 2 per v7x TensorCore keeps the
    # input prefetch overlapped on both cores).
    tm = max(128, min(tm_cap, pl.cdiv(pl.cdiv(M, 4), 128) * 128))
    M_pad = pl.cdiv(M, tm) * tm

    coord_t = coord_flat.T                               # (2, M) lane-dense
    if M_pad != M:
        coord_t = jnp.pad(coord_t, ((0, 0), (0, M_pad - M)))

    full = lambda a: pl.BlockSpec(a.shape, lambda i, _nd=a.ndim: (0,) * _nd)

    out = pl.pallas_call(
        mlp_kernel,
        out_shape=jax.ShapeDtypeStruct((OUT, M_pad), jnp.float32),
        grid_spec=pltpu.PrefetchScalarGridSpec(
            num_scalar_prefetch=0,
            grid=(M_pad // tm,),
            in_specs=[pl.BlockSpec((2, tm), lambda i: (0, i)),
                      full(wsq), full(w2t), full(w4t), full(cvec), full(b4c)],
            out_specs=pl.BlockSpec((OUT, tm), lambda i: (0, i))),
        # VMEM footprint is a few MiB even at tm=2048 (weights are tiny and
        # resident; activations are (32, tm)), well inside the default scoped
        # limit on v5e/v6e and v7x's 64 MiB physical VMEM.
        compiler_params=pltpu.CompilerParams(
            dimension_semantics=("parallel",)),
    )(coord_t, wsq, w2t, w4t, cvec, b4c)

    return out[:, :M].T                                  # (M, 3)


def forward(coord_2D, params, progress=PROGRESS):
    """coord_2D: [B, N, 2] -> rgb [B, N, 3]."""
    B, N, _ = coord_2D.shape
    kparams = prepare_kernel_params(params, progress)
    rgb = neural_image_mlp(coord_2D.reshape(B * N, 2), kparams)
    return rgb.reshape(B, N, OUT)


# ------------------------------ pure-JAX reference -----------------------------
def positional_encoding(x, L, progress, c2f):
    freq = (2.0 ** jnp.arange(L, dtype=jnp.float32)) * np.pi
    spectrum = x[..., None] * freq                              # [..., 2, L]
    sin, cos = jnp.sin(spectrum), jnp.cos(spectrum)
    enc = jnp.stack([sin, cos], axis=-2)                        # [..., 2, 2, L]
    enc = enc.reshape(*x.shape[:-1], 4 * L)
    start, end = c2f
    alpha = (progress - start) / (end - start) * L
    k = jnp.arange(L, dtype=jnp.float32)
    weight = (1.0 - jnp.cos(jnp.clip(alpha - k, 0.0, 1.0) * np.pi)) / 2.0
    shape = enc.shape
    enc = (enc.reshape(-1, L) * weight).reshape(shape)
    return enc


def reference_forward(coord_2D, params, progress=PROGRESS):
    enc = positional_encoding(coord_2D, L_2D, progress, BARF_C2F)
    points_enc = jnp.concatenate([coord_2D, enc], axis=-1)
    feat = points_enc
    for li, (W, b) in enumerate(params):
        if li in SKIP:
            feat = jnp.concatenate([feat, points_enc], axis=-1)
        feat = feat @ W + b
        if li != len(params) - 1:
            feat = jnp.maximum(feat, 0.0)
    return jax.nn.sigmoid(feat)


def init_params(key):
    """PyTorch nn.Linear default init (U(-1/sqrt(fan_in), 1/sqrt(fan_in))),
    with the BARF first-layer scale sqrt(input_2D_dim / 2)."""
    params = []
    for li, (k_in, k_out) in enumerate(LAYER_DIMS):
        key, kw, kb = jax.random.split(key, 3)
        bound = 1.0 / np.sqrt(k_in)
        W = jax.random.uniform(kw, (k_in, k_out), jnp.float32, -bound, bound)  # = W_pt.T
        b = jax.random.uniform(kb, (1, k_out), jnp.float32, -bound, bound)
        if li == 0:
            scale = np.sqrt(POSENC_DIM / 2.0)
            W = W * scale
            b = b * scale
        params.append((W, b))
    return params


# ------------------------------ main -------------------------------------------
if __name__ == "__main__":
    key = jax.random.PRNGKey(0)
    key, kc = jax.random.split(key)
    B, N = 2, 256                                   # M = B*N = 512 rows -> 4 tiles
    coord_2D = jax.random.uniform(kc, (B, N, 2), jnp.float32, -1.0, 1.0)
    params = init_params(key)

    rgb = forward(coord_2D, params)
    rgb = jax.block_until_ready(rgb)
    assert rgb.shape == (B, N, OUT)
    assert bool(jnp.all(jnp.isfinite(rgb)))

    # numerical check vs. the f32 pure-JAX reference (bf16 matmuls -> small drift)
    rgb_ref = reference_forward(coord_2D, params)
    err = float(jnp.max(jnp.abs(rgb - rgb_ref)))
    assert err < 6e-2, f"max abs err vs reference: {err}"
    print("KERNEL_OK")
</pallas_src>

<mosaic_0001>
module attributes {stable_mosaic.version = 11 : i64} {
  func.func @mlp_kernel(%arg0: i32, %arg1: memref<2x128xf32, #tpu.memory_space<vmem>>, %arg2: memref<3x32x32xbf16, #tpu.memory_space<vmem>>, %arg3: memref<32x64xbf16, #tpu.memory_space<vmem>>, %arg4: memref<3x32xbf16, #tpu.memory_space<vmem>>, %arg5: memref<32x11xf32, #tpu.memory_space<vmem>>, %arg6: memref<3x1xf32, #tpu.memory_space<vmem>>, %arg7: memref<3x128xf32, #tpu.memory_space<vmem>>) attributes {dimension_semantics = [#tpu.dimension_semantics<parallel>], iteration_bounds = array<i64: 4>, scalar_prefetch = 0 : i64, scratch_operands = 0 : i64, tpu.core_type = #tpu.core_type<tc>, window_params = [{transform_indices = @transform_0, window_bounds = array<i64: 2, 128>}, {pipeline_mode = #tpu.pipeline_mode<synchronous>, transform_indices = @transform_1, window_bounds = array<i64: 3, 32, 32>}, {pipeline_mode = #tpu.pipeline_mode<synchronous>, transform_indices = @transform_2, window_bounds = array<i64: 32, 64>}, {pipeline_mode = #tpu.pipeline_mode<synchronous>, transform_indices = @transform_3, window_bounds = array<i64: 3, 32>}, {pipeline_mode = #tpu.pipeline_mode<synchronous>, transform_indices = @transform_4, window_bounds = array<i64: 32, 11>}, {pipeline_mode = #tpu.pipeline_mode<synchronous>, transform_indices = @transform_5, window_bounds = array<i64: 3, 1>}, {transform_indices = @transform_6, window_bounds = array<i64: 3, 128>}]} {
    %c0 = arith.constant 0 : index
    %c0_0 = arith.constant 0 : index
    %0 = vector.load %arg1[%c0, %c0_0] : memref<2x128xf32, #tpu.memory_space<vmem>>, vector<1x128xf32>
    %c1 = arith.constant 1 : index
    %c0_1 = arith.constant 0 : index
    %1 = vector.load %arg1[%c1, %c0_1] : memref<2x128xf32, #tpu.memory_space<vmem>>, vector<1x128xf32>
    %c0_2 = arith.constant 0 : index
    %c0_3 = arith.constant 0 : index
    %2 = vector.load %arg5[%c0_2, %c0_3] : memref<32x11xf32, #tpu.memory_space<vmem>>, vector<32x11xf32>
    %3 = vector.extract_strided_slice %2 {offsets = [0, 0], sizes = [32, 1], strides = [1, 1]} : vector<32x11xf32> to vector<32x1xf32>
    %4 = vector.extract_strided_slice %2 {offsets = [0, 1], sizes = [32, 1], strides = [1, 1]} : vector<32x11xf32> to vector<32x1xf32>
    %5 = vector.extract_strided_slice %2 {offsets = [0, 2], sizes = [32, 1], strides = [1, 1]} : vector<32x11xf32> to vector<32x1xf32>
    %6 = vector.extract_strided_slice %2 {offsets = [0, 3], sizes = [32, 1], strides = [1, 1]} : vector<32x11xf32> to vector<32x1xf32>
    %7 = vector.extract_strided_slice %2 {offsets = [0, 4], sizes = [32, 1], strides = [1, 1]} : vector<32x11xf32> to vector<32x1xf32>
    %8 = vector.extract_strided_slice %2 {offsets = [0, 5], sizes = [32, 1], strides = [1, 1]} : vector<32x11xf32> to vector<32x1xf32>
    %9 = vector.extract_strided_slice %2 {offsets = [0, 6], sizes = [32, 1], strides = [1, 1]} : vector<32x11xf32> to vector<32x1xf32>
    %10 = vector.extract_strided_slice %2 {offsets = [0, 7], sizes = [32, 1], strides = [1, 1]} : vector<32x11xf32> to vector<32x1xf32>
    %11 = vector.extract_strided_slice %2 {offsets = [0, 8], sizes = [32, 1], strides = [1, 1]} : vector<32x11xf32> to vector<32x1xf32>
    %12 = vector.extract_strided_slice %2 {offsets = [0, 9], sizes = [32, 1], strides = [1, 1]} : vector<32x11xf32> to vector<32x1xf32>
    %13 = vector.extract_strided_slice %2 {offsets = [0, 10], sizes = [32, 1], strides = [1, 1]} : vector<32x11xf32> to vector<32x1xf32>
    %14 = vector.broadcast %3 : vector<32x1xf32> to vector<32x128xf32>
    %15 = vector.broadcast %0 : vector<1x128xf32> to vector<32x128xf32>
    %16 = arith.mulf %14, %15 : vector<32x128xf32>
    %17 = vector.broadcast %4 : vector<32x1xf32> to vector<32x128xf32>
    %18 = vector.broadcast %1 : vector<1x128xf32> to vector<32x128xf32>
    %19 = arith.mulf %17, %18 : vector<32x128xf32>
    %20 = arith.addf %16, %19 : vector<32x128xf32>
    %21 = vector.broadcast %5 : vector<32x1xf32> to vector<32x128xf32>
    %22 = arith.addf %20, %21 : vector<32x128xf32>
    %23 = math.sin %22 : vector<32x128xf32>
    %24 = arith.truncf %23 : vector<32x128xf32> to vector<32x128xbf16>
    %25 = vector.broadcast %6 : vector<32x1xf32> to vector<32x128xf32>
    %26 = vector.broadcast %0 : vector<1x128xf32> to vector<32x128xf32>
    %27 = arith.mulf %25, %26 : vector<32x128xf32>
    %28 = vector.broadcast %7 : vector<32x1xf32> to vector<32x128xf32>
    %29 = vector.broadcast %1 : vector<1x128xf32> to vector<32x128xf32>
    %30 = arith.mulf %28, %29 : vector<32x128xf32>
    %31 = arith.addf %27, %30 : vector<32x128xf32>
    %32 = vector.broadcast %8 : vector<32x1xf32> to vector<32x128xf32>
    %33 = vector.broadcast %0 : vector<1x128xf32> to vector<32x128xf32>
    %34 = arith.mulf %32, %33 : vector<32x128xf32>
    %35 = vector.broadcast %9 : vector<32x1xf32> to vector<32x128xf32>
    %36 = vector.broadcast %1 : vector<1x128xf32> to vector<32x128xf32>
    %37 = arith.mulf %35, %36 : vector<32x128xf32>
    %38 = arith.addf %34, %37 : vector<32x128xf32>
    %c0_4 = arith.constant 0 : index
    %c0_5 = arith.constant 0 : index
    %c0_6 = arith.constant 0 : index
    %39 = vector.load %arg2[%c0_4, %c0_5, %c0_6] : memref<3x32x32xbf16, #tpu.memory_space<vmem>>, vector<1x32x32xbf16>
    %40 = vector.shape_cast %39 : vector<1x32x32xbf16> to vector<32x32xbf16>
    %cst = arith.constant dense<0.000000e+00> : vector<32x128xf32>
    %41 = tpu.matmul %40, %24, %cst {dimension_numbers = #tpu.dot_dimension_numbers<[1], [0], [0], [1], [0, 0, 1, 1], [], []>} : vector<32x32xbf16>, vector<32x128xbf16>, vector<32x128xf32> -> vector<32x128xf32>
    %42 = arith.addf %41, %31 : vector<32x128xf32>
    %43 = vector.broadcast %10 : vector<32x1xf32> to vector<32x128xf32>
    %44 = arith.addf %42, %43 : vector<32x128xf32>
    %cst_7 = arith.constant 0.000000e+00 : f32
    %45 = vector.broadcast %cst_7 : f32 to vector<32x128xf32>
    %46 = arith.maximumf %44, %45 : vector<32x128xf32>
    %c1_8 = arith.constant 1 : index
    %c0_9 = arith.constant 0 : index
    %c0_10 = arith.constant 0 : index
    %47 = vector.load %arg2[%c1_8, %c0_9, %c0_10] : memref<3x32x32xbf16, #tpu.memory_space<vmem>>, vector<1x32x32xbf16>
    %48 = vector.shape_cast %47 : vector<1x32x32xbf16> to vector<32x32xbf16>
    %49 = arith.truncf %46 : vector<32x128xf32> to vector<32x128xbf16>
    %cst_11 = arith.constant dense<0.000000e+00> : vector<32x128xf32>
    %50 = tpu.matmul %48, %49, %cst_11 {dimension_numbers = #tpu.dot_dimension_numbers<[1], [0], [0], [1], [0, 0, 1, 1], [], []>} : vector<32x32xbf16>, vector<32x128xbf16>, vector<32x128xf32> -> vector<32x128xf32>
    %51 = vector.broadcast %11 : vector<32x1xf32> to vector<32x128xf32>
    %52 = arith.addf %50, %51 : vector<32x128xf32>
    %cst_12 = arith.constant 0.000000e+00 : f32
    %53 = vector.broadcast %cst_12 : f32 to vector<32x128xf32>
    %54 = arith.maximumf %52, %53 : vector<32x128xf32>
    %55 = arith.truncf %54 : vector<32x128xf32> to vector<32x128xbf16>
    %56 = tpu.concatenate %55, %24 in 0 : vector<32x128xbf16>, vector<32x128xbf16> -> vector<64x128xbf16>
    %c0_13 = arith.constant 0 : index
    %c0_14 = arith.constant 0 : index
    %57 = vector.load %arg3[%c0_13, %c0_14] : memref<32x64xbf16, #tpu.memory_space<vmem>>, vector<32x64xbf16>
    %cst_15 = arith.constant dense<0.000000e+00> : vector<32x128xf32>
    %58 = tpu.matmul %57, %56, %cst_15 {dimension_numbers = #tpu.dot_dimension_numbers<[1], [0], [0], [1], [0, 0, 1, 1], [], []>} : vector<32x64xbf16>, vector<64x128xbf16>, vector<32x128xf32> -> vector<32x128xf32>
    %59 = arith.addf %58, %38 : vector<32x128xf32>
    %60 = vector.broadcast %12 : vector<32x1xf32> to vector<32x128xf32>
    %61 = arith.addf %59, %60 : vector<32x128xf32>
    %cst_16 = arith.constant 0.000000e+00 : f32
    %62 = vector.broadcast %cst_16 : f32 to vector<32x128xf32>
    %63 = arith.maximumf %61, %62 : vector<32x128xf32>
    %c2 = arith.constant 2 : index
    %c0_17 = arith.constant 0 : index
    %c0_18 = arith.constant 0 : index
    %64 = vector.load %arg2[%c2, %c0_17, %c0_18] : memref<3x32x32xbf16, #tpu.memory_space<vmem>>, vector<1x32x32xbf16>
    %65 = vector.shape_cast %64 : vector<1x32x32xbf16> to vector<32x32xbf16>
    %66 = arith.truncf %63 : vector<32x128xf32> to vector<32x128xbf16>
    %cst_19 = arith.constant dense<0.000000e+00> : vector<32x128xf32>
    %67 = tpu.matmul %65, %66, %cst_19 {dimension_numbers = #tpu.dot_dimension_numbers<[1], [0], [0], [1], [0, 0, 1, 1], [], []>} : vector<32x32xbf16>, vector<32x128xbf16>, vector<32x128xf32> -> vector<32x128xf32>
    %68 = vector.broadcast %13 : vector<32x1xf32> to vector<32x128xf32>
    %69 = arith.addf %67, %68 : vector<32x128xf32>
    %cst_20 = arith.constant 0.000000e+00 : f32
    %70 = vector.broadcast %cst_20 : f32 to vector<32x128xf32>
    %71 = arith.maximumf %69, %70 : vector<32x128xf32>
    %c0_21 = arith.constant 0 : index
    %c0_22 = arith.constant 0 : index
    %72 = vector.load %arg4[%c0_21, %c0_22] : memref<3x32xbf16, #tpu.memory_space<vmem>>, vector<3x32xbf16>
    %73 = arith.truncf %71 : vector<32x128xf32> to vector<32x128xbf16>
    %cst_23 = arith.constant dense<0.000000e+00> : vector<3x128xf32>
    %74 = tpu.matmul %72, %73, %cst_23 {dimension_numbers = #tpu.dot_dimension_numbers<[1], [0], [0], [1], [0, 0, 1, 1], [], []>} : vector<3x32xbf16>, vector<32x128xbf16>, vector<3x128xf32> -> vector<3x128xf32>
    %c0_24 = arith.constant 0 : index
    %c0_25 = arith.constant 0 : index
    %75 = vector.load %arg6[%c0_24, %c0_25] : memref<3x1xf32, #tpu.memory_space<vmem>>, vector<3x1xf32>
    %76 = vector.broadcast %75 : vector<3x1xf32> to vector<3x128xf32>
    %77 = arith.addf %74, %76 : vector<3x128xf32>
    %78 = arith.negf %77 : vector<3x128xf32>
    %79 = math.exp %78 : vector<3x128xf32>
    %cst_26 = arith.constant 1.000000e+00 : f32
    %80 = vector.broadcast %cst_26 : f32 to vector<3x128xf32>
    %81 = arith.addf %80, %79 : vector<3x128xf32>
    %82 = arith.divf %80, %81 : vector<3x128xf32>
    %c0_27 = arith.constant 0 : index
    %c0_28 = arith.constant 0 : index
    %83 = vector.load %arg7[%c0_27, %c0_28] : memref<3x128xf32, #tpu.memory_space<vmem>>, vector<3x128xf32>
    tpu.vector_store %arg7[%c0_27, %c0_28], %82 {strides = array<i32>} : memref<3x128xf32, #tpu.memory_space<vmem>>, vector<3x128xf32>,
    return
  }
  func.func @transform_0(%arg0: i32) -> (i32, i32) {
    %c0_i32 = arith.constant 0 : i32
    %c0_i32_0 = arith.constant 0 : i32
    return %c0_i32, %arg0 : i32, i32
  }
  func.func @transform_1(%arg0: i32) -> (i32, i32, i32) {
    %c0_i32 = arith.constant 0 : i32
    %c0_i32_0 = arith.constant 0 : i32
    %c0_i32_1 = arith.constant 0 : i32
    %c0_i32_2 = arith.constant 0 : i32
    return %c0_i32, %c0_i32_0, %c0_i32_1 : i32, i32, i32
  }
  func.func @transform_2(%arg0: i32) -> (i32, i32) {
    %c0_i32 = arith.constant 0 : i32
    %c0_i32_0 = arith.constant 0 : i32
    %c0_i32_1 = arith.constant 0 : i32
    return %c0_i32, %c0_i32_0 : i32, i32
  }
  func.func @transform_3(%arg0: i32) -> (i32, i32) {
    %c0_i32 = arith.constant 0 : i32
    %c0_i32_0 = arith.constant 0 : i32
    %c0_i32_1 = arith.constant 0 : i32
    return %c0_i32, %c0_i32_0 : i32, i32
  }
  func.func @transform_4(%arg0: i32) -> (i32, i32) {
    %c0_i32 = arith.constant 0 : i32
    %c0_i32_0 = arith.constant 0 : i32
    %c0_i32_1 = arith.constant 0 : i32
    return %c0_i32, %c0_i32_0 : i32, i32
  }
  func.func @transform_5(%arg0: i32) -> (i32, i32) {
    %c0_i32 = arith.constant 0 : i32
    %c0_i32_0 = arith.constant 0 : i32
    %c0_i32_1 = arith.constant 0 : i32
    return %c0_i32, %c0_i32_0 : i32, i32
  }
  func.func @transform_6(%arg0: i32) -> (i32, i32) {
    %c0_i32 = arith.constant 0 : i32
    %c0_i32_0 = arith.constant 0 : i32
    return %c0_i32, %arg0 : i32, i32
  }
}

</mosaic_0001>

<llo_original>
// kernel: tpu_custom_call.1
$region0: #{tpu_custom_call.1}
  #allocation0 [shape = 'u32[]', space=smem, size = 0x4, offset = 0x4, fixed_abs, tag = 'smem constant byte address 0x4 - core index']
  #allocation1 [shape = 'u32[144,128]{1,0:T(1,128)}', space=vmem, size = 0x12000, scoped, tag = 'internal scratch']
  %s0 = inlined_call_operand.hbm [shape: f32[2,512], index: 0, kind: input, shape index: {}]
  %s1 = inlined_call_operand.vmem [shape: bf16[3,32,32], index: 1, kind: input, shape index: {}]
  %s2 = inlined_call_operand.hbm [shape: bf16[32,64], index: 2, kind: input, shape index: {}]
  %s3 = inlined_call_operand.vmem [shape: bf16[3,32], index: 3, kind: input, shape index: {}]
  %s4 = inlined_call_operand.vmem [shape: f32[32,11], index: 4, kind: input, shape index: {}]
  %s5 = inlined_call_operand.vmem [shape: f32[3,1], index: 5, kind: input, shape index: {}]
  %s6 = inlined_call_operand.hbm [shape: f32[3,512], index: 6, kind: output, shape index: {}]
  %s7 = sld [smem:[#allocation0]]
  $region65: #{tpu_custom_call.1} parent=0
    _
  %s9 = ssub.s32 1, %s7
  %s10 = scalar_select 0, %s9, %s7
  $region1: #{tpu_custom_call.1} parent=0
    #allocation2 [shape = 'u8[2048]{0}', space=vmem, size = 0x800, scoped, tag = 'input window, operand 0']
    #allocation3 [shape = 's32[2]{0}', space=sflag, size = 0x8, scoped, tag = 'scoped memory for tpu_custom_call.1']
    #allocation4 [shape = 's32[2]{0}', space=sflag, size = 0x8, scoped, tag = 'scoped memory for tpu_custom_call.1']
    #allocation5 [shape = 'u8[8192]{0}', space=vmem, size = 0x2000, scoped, tag = 'input window, operand 2, single buffered']
    #allocation6 [shape = 's32[1]{0}', space=sflag, size = 0x4, scoped, tag = 'scoped memory for tpu_custom_call.1']
    #allocation7 [shape = 'u8[4096]{0}', space=vmem, size = 0x1000, scoped, tag = 'output window, operand 0']
    %11 = vsyncpa [#allocation3], 0
    %s12 = scalar_lea.sflag [#allocation3], 1
    %13 = vsyncpa %s12, 0
    %14 = vsyncpa [#allocation6], 0
    %15 = vsyncpa [#allocation4], 0
    %s16 = scalar_lea.sflag [#allocation4], 1
    %17 = vsyncpa %s16, 0
    loop: start=0, step=1, limit=6
    $region2: #{tpu_custom_call.1} parent=1 // loop_pre_header
      _
    $region3: #{tpu_custom_call.1} parent=1 // loop_header
      %s19 = sphi 0, %s23
      %p20 = scmp.ge.s32.totalorder %s19, 6
      %s29 = sphi 0, %s31
      %s32 = sphi 0, %s29
      %s33 = sphi 0, %s32
      %s49 = sphi 0, %s33
      %s53 = sphi 0, %s53
      %s55 = sphi 0, %s53
      %s56 = sphi 0, %s55
      %s70 = sphi 0, %s56
      %s74 = sphi 0, %s74
      %s76 = sphi 0, %s74
      %s77 = sphi 0, %s76
      %s91 = sphi 0, %s77
      %s95 = sphi 0, %s95
      %s97 = sphi 0, %s95
      %s98 = sphi 0, %s97
      %s112 = sphi 0, %s98
      %s116 = sphi 0, %s116
      %s118 = sphi 0, %s116
      %s119 = sphi 0, %s118
      %s133 = sphi 0, %s119
      %s137 = sphi 0, %s137
      %s139 = sphi 0, %s137
      %s140 = sphi 0, %s139
      %s154 = sphi 0, %s140
      %s160 = sphi 0, %s162
      %s163 = sphi 0, %s160
      %s164 = sphi 0, %s163
      %s180 = sphi 0, %s164
    $region4: #{tpu_custom_call.1} parent=1 // loop_header_branch
      %22 = sbr.rel (%p20) target = $region8
    $region5: #{tpu_custom_call.1} parent=1 // loop_body
      %s24 = ssub.s32 %s19, 1
      %s25 = ssub.s32 %s19, 2
      %s26 = sadd.s32 %s19, 1
      %s27 = ssub.s32 %s19, %s26
      %p28 = scmp.eq.s32.totalorder %s27, 0
      %s30 = sadd.s32 %s29, 1
      %s31 = scalar_select %p28, %s29, %s30
      %p34 = pneg %p28
      %p35 = scmp.eq.s32.totalorder %s19, 3
      %p36 = por %p34, %p35
      %p37 = scmp.ne.s32.totalorder %s29, %s32
      %p38 = scmp.eq.s32.totalorder %s19, 0
      %p39 = por %p37, %p38
      %p40 = scmp.ne.s32.totalorder %s29, %s32
      %p41 = scmp.eq.s32.totalorder %s24, 3
      %p42 = por %p40, %p41
      %p43 = scmp.ne.s32.totalorder %s32, %s33
      %p44 = scmp.eq.s32.totalorder %s24, 0
      %p45 = por %p43, %p44
      %p46 = scmp.ne.s32.totalorder %s32, %s33
      %p47 = scmp.eq.s32.totalorder %s25, 3
      %p48 = por %p46, %p47
      %p50 = scmp.ne.s32.totalorder %s33, %s49
      %p51 = scmp.eq.s32.totalorder %s25, 0
      %p52 = por %p50, %p51
      %s54 = sadd.s32 %s53, 1
      %p57 = scmp.eq.s32.totalorder %s19, 3
      %p58 = scmp.ne.s32.totalorder %s53, %s55
      %p59 = scmp.eq.s32.totalorder %s19, 0
      %p60 = por %p58, %p59
      %p61 = scmp.ne.s32.totalorder %s53, %s55
      %p62 = scmp.eq.s32.totalorder %s24, 3
      %p63 = por %p61, %p62
      %p64 = scmp.ne.s32.totalorder %s55, %s56
      %p65 = scmp.eq.s32.totalorder %s24, 0
      %p66 = por %p64, %p65
      %p67 = scmp.ne.s32.totalorder %s55, %s56
      %p68 = scmp.eq.s32.totalorder %s25, 3
      %p69 = por %p67, %p68
      %p71 = scmp.ne.s32.totalorder %s56, %s70
      %p72 = scmp.eq.s32.totalorder %s25, 0
      %p73 = por %p71, %p72
      %s75 = sadd.s32 %s74, 1
      %p78 = scmp.eq.s32.totalorder %s19, 3
      %p79 = scmp.ne.s32.totalorder %s74, %s76
      %p80 = scmp.eq.s32.totalorder %s19, 0
      %p81 = por %p79, %p80
      %p82 = scmp.ne.s32.totalorder %s74, %s76
      %p83 = scmp.eq.s32.totalorder %s24, 3
      %p84 = por %p82, %p83
      %p85 = scmp.ne.s32.totalorder %s76, %s77
      %p86 = scmp.eq.s32.totalorder %s24, 0
      %p87 = por %p85, %p86
      %p88 = scmp.ne.s32.totalorder %s76, %s77
      %p89 = scmp.eq.s32.totalorder %s25, 3
      %p90 = por %p88, %p89
      %p92 = scmp.ne.s32.totalorder %s77, %s91
      %p93 = scmp.eq.s32.totalorder %s25, 0
      %p94 = por %p92, %p93
      %s96 = sadd.s32 %s95, 1
      %p99 = scmp.eq.s32.totalorder %s19, 3
      %p100 = scmp.ne.s32.totalorder %s95, %s97
      %p101 = scmp.eq.s32.totalorder %s19, 0
      %p102 = por %p100, %p101
      %p103 = scmp.ne.s32.totalorder %s95, %s97
      %p104 = scmp.eq.s32.totalorder %s24, 3
      %p105 = por %p103, %p104
      %p106 = scmp.ne.s32.totalorder %s97, %s98
      %p107 = scmp.eq.s32.totalorder %s24, 0
      %p108 = por %p106, %p107
      %p109 = scmp.ne.s32.totalorder %s97, %s98
      %p110 = scmp.eq.s32.totalorder %s25, 3
      %p111 = por %p109, %p110
      %p113 = scmp.ne.s32.totalorder %s98, %s112
      %p114 = scmp.eq.s32.totalorder %s25, 0
      %p115 = por %p113, %p114
      %s117 = sadd.s32 %s116, 1
      %p120 = scmp.eq.s32.totalorder %s19, 3
      %p121 = scmp.ne.s32.totalorder %s116, %s118
      %p122 = scmp.eq.s32.totalorder %s19, 0
      %p123 = por %p121, %p122
      %p124 = scmp.ne.s32.totalorder %s116, %s118
      %p125 = scmp.eq.s32.totalorder %s24, 3
      %p126 = por %p124, %p125
      %p127 = scmp.ne.s32.totalorder %s118, %s119
      %p128 = scmp.eq.s32.totalorder %s24, 0
      %p129 = por %p127, %p128
      %p130 = scmp.ne.s32.totalorder %s118, %s119
      %p131 = scmp.eq.s32.totalorder %s25, 3
      %p132 = por %p130, %p131
      %p134 = scmp.ne.s32.totalorder %s119, %s133
      %p135 = scmp.eq.s32.totalorder %s25, 0
      %p136 = por %p134, %p135
      %s138 = sadd.s32 %s137, 1
      %p141 = scmp.eq.s32.totalorder %s19, 3
      %p142 = scmp.ne.s32.totalorder %s137, %s139
      %p143 = scmp.eq.s32.totalorder %s19, 0
      %p144 = por %p142, %p143
      %p145 = scmp.ne.s32.totalorder %s137, %s139
      %p146 = scmp.eq.s32.totalorder %s24, 3
      %p147 = por %p145, %p146
      %p148 = scmp.ne.s32.totalorder %s139, %s140
      %p149 = scmp.eq.s32.totalorder %s24, 0
      %p150 = por %p148, %p149
      %p151 = scmp.ne.s32.totalorder %s139, %s140
      %p152 = scmp.eq.s32.totalorder %s25, 3
      %p153 = por %p151, %p152
      %p155 = scmp.ne.s32.totalorder %s140, %s154
      %p156 = scmp.eq.s32.totalorder %s25, 0
      %p157 = por %p155, %p156
      %s158 = ssub.s32 %s19, %s26
      %p159 = scmp.eq.s32.totalorder %s158, 0
      %s161 = sadd.s32 %s160, 1
      %s162 = scalar_select %p159, %s160, %s161
      %p165 = pneg %p159
      %p166 = scmp.eq.s32.totalorder %s19, 3
      %p167 = por %p165, %p166
      %p168 = scmp.ne.s32.totalorder %s160, %s163
      %p169 = scmp.eq.s32.totalorder %s19, 0
      %p170 = por %p168, %p169
      %p171 = scmp.ne.s32.totalorder %s160, %s163
      %p172 = scmp.eq.s32.totalorder %s24, 3
      %p173 = por %p171, %p172
      %p174 = scmp.ne.s32.totalorder %s163, %s164
      %p175 = scmp.eq.s32.totalorder %s24, 0
      %p176 = por %p174, %p175
      %p177 = scmp.ne.s32.totalorder %s163, %s164
      %p178 = scmp.eq.s32.totalorder %s25, 3
      %p179 = por %p177, %p178
      %p181 = scmp.ne.s32.totalorder %s164, %s180
      %p182 = scmp.eq.s32.totalorder %s25, 0
      %p183 = por %p181, %p182
      %p184 = scmp.le.s32.totalorder 1, %s19
      %p185 = scmp.lt.s32.totalorder %s19, 5
      %p186 = pnand %p184, %p185
      %p187 = pneg %p186
      // Predicated region
      $region9: #{tpu_custom_call.1} parent=5 // pred_check
        _
      $region10: #{tpu_custom_call.1} parent=5 // pred_check_branch
        %189 = sbr.rel (%p186) target = $region12
      $region11: #{tpu_custom_call.1} parent=5 // pred_region
        %s190 = ssub.s32 %s19, 1
        // Predicated region
        $region13: #{tpu_custom_call.1} parent=11 // pred_check
          %p191 = pneg %p66
        $region14: #{tpu_custom_call.1} parent=11 // pred_check_branch
          %193 = sbr.rel (%p191) target = $region16
        $region15: #{tpu_custom_call.1} parent=11 // pred_region
          _
        $region16: #{tpu_custom_call.1} parent=11 // pred_fallthru
          _
        // Predicated region
        $region17: #{tpu_custom_call.1} parent=11 // pred_check
          %p194 = pneg %p87
        $region18: #{tpu_custom_call.1} parent=11 // pred_check_branch
          %196 = sbr.rel (%p194) target = $region20
        $region19: #{tpu_custom_call.1} parent=11 // pred_region
          %s198 = ssub.s32 256, 256
          %199 = vsyncadd [#allocation6], %s198
          %s200 = sshll.u32 [#allocation5], 4
          %s201 = int_to_ptr.vmem [resolvable:$true] %s200
          %206 = dma.hbm_to_vmem [thread:$0]  %s2, 256, %s201, [#allocation6], 64, 64, 4
        $region20: #{tpu_custom_call.1} parent=11 // pred_fallthru
          _
        // Predicated region
        $region21: #{tpu_custom_call.1} parent=11 // pred_check
          %p207 = pneg %p108
        $region22: #{tpu_custom_call.1} parent=11 // pred_check_branch
          %209 = sbr.rel (%p207) target = $region24
        $region23: #{tpu_custom_call.1} parent=11 // pred_region
          _
        $region24: #{tpu_custom_call.1} parent=11 // pred_fallthru
          _
        // Predicated region
        $region25: #{tpu_custom_call.1} parent=11 // pred_check
          %p210 = pneg %p129
        $region26: #{tpu_custom_call.1} parent=11 // pred_check_branch
          %212 = sbr.rel (%p210) target = $region28
        $region27: #{tpu_custom_call.1} parent=11 // pred_region
          _
        $region28: #{tpu_custom_call.1} parent=11 // pred_fallthru
          _
        // Predicated region
        $region29: #{tpu_custom_call.1} parent=11 // pred_check
          %p213 = pneg %p150
        $region30: #{tpu_custom_call.1} parent=11 // pred_check_branch
          %215 = sbr.rel (%p213) target = $region32
        $region31: #{tpu_custom_call.1} parent=11 // pred_region
          _
        $region32: #{tpu_custom_call.1} parent=11 // pred_fallthru
          _
      $region12: #{tpu_custom_call.1} parent=5 // pred_fallthru
        _
      %p216 = scmp.lt.s32.totalorder %s19, 4
      // Predicated region
      $region33: #{tpu_custom_call.1} parent=5 // pred_check
        %p217 = pneg %p216
      $region34: #{tpu_custom_call.1} parent=5 // pred_check_branch
        %219 = sbr.rel (%p217) target = $region36
      $region35: #{tpu_custom_call.1} parent=5 // pred_region
        // Predicated region
        $region37: #{tpu_custom_call.1} parent=35 // pred_check
          %p220 = pneg %p39
        $region38: #{tpu_custom_call.1} parent=35 // pred_check_branch
          %222 = sbr.rel (%p220) target = $region40
        $region39: #{tpu_custom_call.1} parent=35 // pred_region
          %s223 = sand.u32 %s29, 1
          %s224 = scalar_lea.sflag [#allocation3], %s223
          %s225 = sand.u32 %s29, 1
          %s226 = smul.addr %s225, 2
          %s227 = scalar_lea.vmem [#allocation2], %s226
          %s229 = ssub.s32 32, 32
          %230 = vsyncadd %s224, %s229
          %s231 = smul.addr %s19, 32
          %s232 = scalar_lea.hbm %s0, %s231
          %s234 = sshll.u32 %s227, 4
          %s235 = int_to_ptr.vmem [resolvable:$true] %s234
          %237 = dma.hbm_to_vmem [thread:$0]  %s232, 32, %s235, %s224
        $region40: #{tpu_custom_call.1} parent=35 // pred_fallthru
          _
      $region36: #{tpu_custom_call.1} parent=5 // pred_fallthru
        _
      %p238 = scmp.le.s32.totalorder 1, %s19
      %p239 = scmp.lt.s32.totalorder %s19, 5
      %p240 = pnand %p238, %p239
      %p241 = pneg %p240
      // Predicated region
      $region41: #{tpu_custom_call.1} parent=5 // pred_check
        _
      $region42: #{tpu_custom_call.1} parent=5 // pred_check_branch
        %243 = sbr.rel (%p240) target = $region44
      $region43: #{tpu_custom_call.1} parent=5 // pred_region
        %s244 = ssub.s32 %s19, 1
        %s245 = sand.u32 %s32, 1
        %s246 = scalar_lea.sflag [#allocation3], %s245
        %s247 = sand.u32 %s32, 1
        %s248 = smul.addr %s247, 2
        %s249 = scalar_lea.vmem [#allocation2], %s248
        // Predicated region
        $region45: #{tpu_custom_call.1} parent=43 // pred_check
          %p250 = pneg %p45
        $region46: #{tpu_custom_call.1} parent=43 // pred_check_branch
          %252 = sbr.rel (%p250) target = $region48
        $region47: #{tpu_custom_call.1} parent=43 // pred_region
          %253 = dma.done %s246, 32
        $region48: #{tpu_custom_call.1} parent=43 // pred_fallthru
          _
        // Predicated region
        $region49: #{tpu_custom_call.1} parent=43 // pred_check
          %p254 = pneg %p87
        $region50: #{tpu_custom_call.1} parent=43 // pred_check_branch
          %256 = sbr.rel (%p254) target = $region52
        $region51: #{tpu_custom_call.1} parent=43 // pred_region
          %257 = dma.done [#allocation6], 256
        $region52: #{tpu_custom_call.1} parent=43 // pred_fallthru
          _
        %s258 = sand.u32 %s32, 1
        %s259 = scalar_lea.sflag [#allocation3], %s258
        %s260 = sand.u32 %s32, 1
        %s261 = smul.addr %s260, 2
        %s262 = scalar_lea.vmem [#allocation2], %s261
        %p263 = pneg %p45
        %p264 = pneg %p42
        %p265 = pneg %p66
        %p266 = pneg %p63
        %p267 = pneg %p87
        %p268 = pneg %p84
        %p269 = pneg %p108
        %p270 = pneg %p105
        %p271 = pneg %p129
        %p272 = pneg %p126
        %p273 = pneg %p150
        %p274 = pneg %p147
        %p275 = pneg %p176
        %p276 = pneg %p173
        %s277 = sand.u32 %s163, 1
        %s278 = scalar_lea.sflag [#allocation4], %s277
        %s279 = sand.u32 %s163, 1
        %s280 = smul.addr %s279, 4
        %s281 = scalar_lea.vmem [#allocation7], %s280
        %v283 = vld [vmem:[%s249] sm:$0x1]
        %v284 = vld [vmem:[%s249 + $0x1] sm:$0x1]
        %v285 = vld [vmem:[%s4] sm:$0xff]
        %v286 = vld [vmem:[%s4 + $0x8] sm:$0xff]
        %v287 = vld [vmem:[%s4 + $0x10] sm:$0xff]
        %v288 = vld [vmem:[%s4 + $0x18] sm:$0xff]
        %290 = vset.pattern.permute.xlu0 0
        %291 = vperm.xlu0 %290, %v285
        %v292 = vpop.permute.xlu0 %291
        %295 = vset.pattern.permute.xlu0 0
        %296 = vperm.xlu0 %295, %v286
        %v297 = vpop.permute.xlu0 %296
        %300 = vset.pattern.permute.xlu0 0
        %301 = vperm.xlu0 %300, %v287
        %v302 = vpop.permute.xlu0 %301
        %305 = vset.pattern.permute.xlu0 0
        %306 = vperm.xlu0 %305, %v288
        %v307 = vpop.permute.xlu0 %306
        %v309 = vlaneseq
        %v310 = vshrl.u32 %v309, 7
        %v311 = vsub.s32 0, %v310
        %v312 = vrot.slane %v283, %v311
        %v313 = vmul.f32 %v292, %v312
        %v314 = vmul.f32 %v297, %v312
        %v315 = vmul.f32 %v302, %v312
        %v316 = vmul.f32 %v307, %v312
        %317 = vset.pattern.permute.xlu0 1
        %318 = vperm.xlu0 %317, %v285
        %v319 = vpop.permute.xlu0 %318
        %321 = vset.pattern.permute.xlu0 1
        %322 = vperm.xlu0 %321, %v286
        %v323 = vpop.permute.xlu0 %322
        %325 = vset.pattern.permute.xlu0 1
        %326 = vperm.xlu0 %325, %v287
        %v327 = vpop.permute.xlu0 %326
        %329 = vset.pattern.permute.xlu0 1
        %330 = vperm.xlu0 %329, %v288
        %v331 = vpop.permute.xlu0 %330
        %v333 = vlaneseq
        %v334 = vshrl.u32 %v333, 7
        %v335 = vsub.s32 0, %v334
        %v336 = vrot.slane %v284, %v335
        %v337 = vmul.f32 %v319, %v336
        %v338 = vmul.f32 %v323, %v336
        %v339 = vmul.f32 %v327, %v336
        %v340 = vmul.f32 %v331, %v336
        %v341 = vadd.f32 %v313, %v337
        %v342 = vadd.f32 %v314, %v338
        %v343 = vadd.f32 %v315, %v339
        %v344 = vadd.f32 %v316, %v340
        %345 = vset.pattern.permute.xlu0 2
        %346 = vperm.xlu0 %345, %v285
        %v347 = vpop.permute.xlu0 %346
        %349 = vset.pattern.permute.xlu0 2
        %350 = vperm.xlu0 %349, %v286
        %v351 = vpop.permute.xlu0 %350
        %353 = vset.pattern.permute.xlu0 2
        %354 = vperm.xlu0 %353, %v287
        %v355 = vpop.permute.xlu0 %354
        %357 = vset.pattern.permute.xlu0 2
        %358 = vperm.xlu0 %357, %v288
        %v359 = vpop.permute.xlu0 %358
        %v361 = vadd.f32 %v341, %v347
        %v362 = vadd.f32 %v342, %v351
        %v363 = vadd.f32 %v343, %v355
        %v364 = vadd.f32 %v344, %v359
        %v365 = vand.u32 2147483647, %v361
        %vm366 = vcmp.le.f32.partialorder %v365, 0.7853982
        %vm367 = vcmp.lt.s32.totalorder %v361, 0
        %v368 = vand.u32 %v361, 2139095040
        %v369 = vshrl.u32 %v368, 23
        %v370 = vsub.s32 %v369, 127
        %v371 = vand.u32 2147483647, %v361
        %v372 = vand.u32 %v371, 8388607
        %v373 = vor.u32 %v372, 8388608
        %v374 = vsub.s32 0, %v373
        %v375 = vadd.s32 %v370, 1
        %vm376 = vcmp.gt.s32.totalorder %v375, 0
        %v377 = vsel %vm376, %v375, 0
        %v378 = vshrl.u32 %v377, 5
        %v379 = vand.u32 %v377, 31
        %v380 = vsub.s32 32, %v379
        %v381 = vshrl.u32 683565275, %v380
        %v382 = vshll.u32 683565275, %v379
        %v383 = vshrl.u32 2475754826, %v380
        %v384 = vor.u32 %v382, %v383
        %v385 = vshll.u32 2475754826, %v379
        %v386 = vshrl.u32 2131351028, %v380
        %v387 = vor.u32 %v385, %v386
        %v388 = vshll.u32 2131351028, %v379
        %v389 = vshrl.u32 2102212464, %v380
        %v390 = vor.u32 %v388, %v389
        %v391 = vshll.u32 2102212464, %v379
        %v392 = vshrl.u32 920167782, %v380
        %v393 = vor.u32 %v391, %v392
        %v394 = vshll.u32 920167782, %v379
        %v395 = vshrl.u32 1326507024, %v380
        %v396 = vor.u32 %v394, %v395
        %vm397 = vcmp.lt.s32.totalorder %v378, 1
        %vm398 = vcmp.lt.s32.totalorder %v378, 2
        %vm399 = vcmp.lt.s32.totalorder %v378, 3
        %vm400 = vcmp.lt.s32.totalorder %v378, 4
        %v401 = vsel %vm397, %v381, %v384
        %v402 = vsel %vm400, %v390, 2102212464
        %v403 = vsel %vm399, %v387, %v402
        %v404 = vsel %vm398, %v401, %v403
        %v405 = vsel %vm397, %v384, %v387
        %v406 = vsel %vm400, %v393, 920167782
        %v407 = vsel %vm399, %v390, %v406
        %v408 = vsel %vm398, %v405, %v407
        %v409 = vsel %vm397, %v387, %v390
        %v410 = vsel %vm400, %v396, 1326507024
        %v411 = vsel %vm399, %v393, %v410
        %v412 = vsel %vm398, %v409, %v411
        %v413 = vshll.u32 %v373, 8
        %v414 = vmul.u32.u64.compose %v413, %v412
        %v415 = vextract.low.u32 %v414
        %v416 = vextract.high.u32 %v414
        %v417 = vmul.u32.u64.compose %v413, %v408
        %v418 = vextract.low.u32 %v417
        %v419 = vextract.high.u32 %v417
        %v420 = vmul.u32 %v413, %v404
        %v421 = vadd.s32 %v416, %v418
        %vm422 = vc.u32 %v416, %v418
        %v423 = vadd.s32 %v419, 1
        %v424 = vsel %vm422, %v423, %v419
        %v425 = vadd.s32 %v420, %v424
        %v426 = vadd.s32 %v425, 536870912
        %v427 = vshrl.u32 %v426, 30
        %v428 = vshll.u32 %v427, 30
        %v429 = vsub.s32 %v425, %v428
        %vm430 = vcmp.lt.s32.totalorder %v429, 0
        %v431 = vsub.s32 0, %v429
        %v432 = vsel %vm430, %v431, %v429
        %v433 = vclz %v432
        %v434 = vsub.s32 %v433, 2
        %vm435 = vcmp.gt.s32.totalorder 0, %v434
        %v436 = vsel %vm435, 0, %v434
        %v437 = vsub.s32 32, %v436
        %v438 = vshll.u32 %v429, %v436
        %v439 = vshrl.u32 %v421, %v437
        %v440 = vor.u32 %v438, %v439
        %v441 = vsub.s32 4294967266, %v436
        %v442 = vadd.s32 %v441, 127
        %v443 = vshll.u32 %v442, 23
        %v444 = vor.u32 4788187, %v443
        %v445 = vand.u32 2147483647, %v444
        %v447 = vcvt.s32.f32 %v440
        %v448 = vmul.f32 %v447, %v445
        %v449 = vxor.u32 %v448, 2147483648
        %v450 = vsel %vm367, %v449, %v448
        %v451 = vsub.s32 4, %v427
        %v452 = vsel %vm367, %v451, %v427
        %v453 = vsel %vm366, %v361, %v450
        %v454 = vsel %vm366, 0, %v452
        %v455 = vcosq.f32.pop %v453
        %v456 = vsinq.f32.pop %v453
        %vm457 = vweird.f32 %v361
        %v458 = vadd.s32 %v454, 3
        %v459 = vand.u32 %v458, 3
        %vm460 = vcmp.lt.s32.totalorder %v459, 2
        %vm461 = vcmp.eq.s32.totalorder %v459, 0
        %v462 = vxor.u32 %v456, 2147483648
        %v463 = vsel %vm461, %v455, %v462
        %vm464 = vcmp.eq.s32.totalorder %v459, 2
        %v465 = vxor.u32 %v455, 2147483648
        %v466 = vsel %vm464, %v465, %v456
        %v467 = vsel %vm460, %v463, %v466
        %v468 = vsel %vm457, nan, %v467
        %v469 = vand.u32 2147483647, %v362
        %vm470 = vcmp.le.f32.partialorder %v469, 0.7853982
        %vm471 = vcmp.lt.s32.totalorder %v362, 0
        %v472 = vand.u32 %v362, 2139095040
        %v473 = vshrl.u32 %v472, 23
        %v474 = vsub.s32 %v473, 127
        %v475 = vand.u32 2147483647, %v362
        %v476 = vand.u32 %v475, 8388607
        %v477 = vor.u32 %v476, 8388608
        %v478 = vsub.s32 0, %v477
        %v479 = vadd.s32 %v474, 1
        %vm480 = vcmp.gt.s32.totalorder %v479, 0
        %v481 = vsel %vm480, %v479, 0
        %v482 = vshrl.u32 %v481, 5
        %v483 = vand.u32 %v481, 31
        %v484 = vsub.s32 32, %v483
        %v485 = vshrl.u32 683565275, %v484
        %v486 = vshll.u32 683565275, %v483
        %v487 = vshrl.u32 2475754826, %v484
        %v488 = vor.u32 %v486, %v487
        %v489 = vshll.u32 2475754826, %v483
        %v490 = vshrl.u32 2131351028, %v484
        %v491 = vor.u32 %v489, %v490
        %v492 = vshll.u32 2131351028, %v483
        %v493 = vshrl.u32 2102212464, %v484
        %v494 = vor.u32 %v492, %v493
        %v495 = vshll.u32 2102212464, %v483
        %v496 = vshrl.u32 920167782, %v484
        %v497 = vor.u32 %v495, %v496
        %v498 = vshll.u32 920167782, %v483
        %v499 = vshrl.u32 1326507024, %v484
        %v500 = vor.u32 %v498, %v499
        %vm501 = vcmp.lt.s32.totalorder %v482, 1
        %vm502 = vcmp.lt.s32.totalorder %v482, 2
        %vm503 = vcmp.lt.s32.totalorder %v482, 3
        %vm504 = vcmp.lt.s32.totalorder %v482, 4
        %v505 = vsel %vm501, %v485, %v488
        %v506 = vsel %vm504, %v494, 2102212464
        %v507 = vsel %vm503, %v491, %v506
        %v508 = vsel %vm502, %v505, %v507
        %v509 = vsel %vm501, %v488, %v491
        %v510 = vsel %vm504, %v497, 920167782
        %v511 = vsel %vm503, %v494, %v510
        %v512 = vsel %vm502, %v509, %v511
        %v513 = vsel %vm501, %v491, %v494
        %v514 = vsel %vm504, %v500, 1326507024
        %v515 = vsel %vm503, %v497, %v514
        %v516 = vsel %vm502, %v513, %v515
        %v517 = vshll.u32 %v477, 8
        %v518 = vmul.u32.u64.compose %v517, %v516
        %v519 = vextract.low.u32 %v518
        %v520 = vextract.high.u32 %v518
        %v521 = vmul.u32.u64.compose %v517, %v512
        %v522 = vextract.low.u32 %v521
        %v523 = vextract.high.u32 %v521
        %v524 = vmul.u32 %v517, %v508
        %v525 = vadd.s32 %v520, %v522
        %vm526 = vc.u32 %v520, %v522
        %v527 = vadd.s32 %v523, 1
        %v528 = vsel %vm526, %v527, %v523
        %v529 = vadd.s32 %v524, %v528
        %v530 = vadd.s32 %v529, 536870912
        %v531 = vshrl.u32 %v530, 30
        %v532 = vshll.u32 %v531, 30
        %v533 = vsub.s32 %v529, %v532
        %vm534 = vcmp.lt.s32.totalorder %v533, 0
        %v535 = vsub.s32 0, %v533
        %v536 = vsel %vm534, %v535, %v533
        %v537 = vclz %v536
        %v538 = vsub.s32 %v537, 2
        %vm539 = vcmp.gt.s32.totalorder 0, %v538
        %v540 = vsel %vm539, 0, %v538
        %v541 = vsub.s32 32, %v540
        %v542 = vshll.u32 %v533, %v540
        %v543 = vshrl.u32 %v525, %v541
        %v544 = vor.u32 %v542, %v543
        %v545 = vsub.s32 4294967266, %v540
        %v546 = vadd.s32 %v545, 127
        %v547 = vshll.u32 %v546, 23
        %v548 = vor.u32 4788187, %v547
        %v549 = vand.u32 2147483647, %v548
        %v551 = vcvt.s32.f32 %v544
        %v552 = vmul.f32 %v551, %v549
        %v553 = vxor.u32 %v552, 2147483648
        %v554 = vsel %vm471, %v553, %v552
        %v555 = vsub.s32 4, %v531
        %v556 = vsel %vm471, %v555, %v531
        %v557 = vsel %vm470, %v362, %v554
        %v558 = vsel %vm470, 0, %v556
        %v559 = vcosq.f32.pop %v557
        %v560 = vsinq.f32.pop %v557
        %vm561 = vweird.f32 %v362
        %v562 = vadd.s32 %v558, 3
        %v563 = vand.u32 %v562, 3
        %vm564 = vcmp.lt.s32.totalorder %v563, 2
        %vm565 = vcmp.eq.s32.totalorder %v563, 0
        %v566 = vxor.u32 %v560, 2147483648
        %v567 = vsel %vm565, %v559, %v566
        %vm568 = vcmp.eq.s32.totalorder %v563, 2
        %v569 = vxor.u32 %v559, 2147483648
        %v570 = vsel %vm568, %v569, %v560
        %v571 = vsel %vm564, %v567, %v570
        %v572 = vsel %vm561, nan, %v571
        %v573 = vand.u32 2147483647, %v363
        %vm574 = vcmp.le.f32.partialorder %v573, 0.7853982
        %vm575 = vcmp.lt.s32.totalorder %v363, 0
        %v576 = vand.u32 %v363, 2139095040
        %v577 = vshrl.u32 %v576, 23
        %v578 = vsub.s32 %v577, 127
        %v579 = vand.u32 2147483647, %v363
        %v580 = vand.u32 %v579, 8388607
        %v581 = vor.u32 %v580, 8388608
        %v582 = vsub.s32 0, %v581
        %v583 = vadd.s32 %v578, 1
        %vm584 = vcmp.gt.s32.totalorder %v583, 0
        %v585 = vsel %vm584, %v583, 0
        %v586 = vshrl.u32 %v585, 5
        %v587 = vand.u32 %v585, 31
        %v588 = vsub.s32 32, %v587
        %v589 = vshrl.u32 683565275, %v588
        %v590 = vshll.u32 683565275, %v587
        %v591 = vshrl.u32 2475754826, %v588
        %v592 = vor.u32 %v590, %v591
        %v593 = vshll.u32 2475754826, %v587
        %v594 = vshrl.u32 2131351028, %v588
        %v595 = vor.u32 %v593, %v594
        %v596 = vshll.u32 2131351028, %v587
        %v597 = vshrl.u32 2102212464, %v588
        %v598 = vor.u32 %v596, %v597
        %v599 = vshll.u32 2102212464, %v587
        %v600 = vshrl.u32 920167782, %v588
        %v601 = vor.u32 %v599, %v600
        %v602 = vshll.u32 920167782, %v587
        %v603 = vshrl.u32 1326507024, %v588
        %v604 = vor.u32 %v602, %v603
        %vm605 = vcmp.lt.s32.totalorder %v586, 1
        %vm606 = vcmp.lt.s32.totalorder %v586, 2
        %vm607 = vcmp.lt.s32.totalorder %v586, 3
        %vm608 = vcmp.lt.s32.totalorder %v586, 4
        %v609 = vsel %vm605, %v589, %v592
        %v610 = vsel %vm608, %v598, 2102212464
        %v611 = vsel %vm607, %v595, %v610
        %v612 = vsel %vm606, %v609, %v611
        %v613 = vsel %vm605, %v592, %v595
        %v614 = vsel %vm608, %v601, 920167782
        %v615 = vsel %vm607, %v598, %v614
        %v616 = vsel %vm606, %v613, %v615
        %v617 = vsel %vm605, %v595, %v598
        %v618 = vsel %vm608, %v604, 1326507024
        %v619 = vsel %vm607, %v601, %v618
        %v620 = vsel %vm606, %v617, %v619
        %v621 = vshll.u32 %v581, 8
        %v622 = vmul.u32.u64.compose %v621, %v620
        %v623 = vextract.low.u32 %v622
        %v624 = vextract.high.u32 %v622
        %v625 = vmul.u32.u64.compose %v621, %v616
        %v626 = vextract.low.u32 %v625
        %v627 = vextract.high.u32 %v625
        %v628 = vmul.u32 %v621, %v612
        %v629 = vadd.s32 %v624, %v626
        %vm630 = vc.u32 %v624, %v626
        %v631 = vadd.s32 %v627, 1
        %v632 = vsel %vm630, %v631, %v627
        %v633 = vadd.s32 %v628, %v632
        %v634 = vadd.s32 %v633, 536870912
        %v635 = vshrl.u32 %v634, 30
        %v636 = vshll.u32 %v635, 30
        %v637 = vsub.s32 %v633, %v636
        %vm638 = vcmp.lt.s32.totalorder %v637, 0
        %v639 = vsub.s32 0, %v637
        %v640 = vsel %vm638, %v639, %v637
        %v641 = vclz %v640
        %v642 = vsub.s32 %v641, 2
        %vm643 = vcmp.gt.s32.totalorder 0, %v642
        %v644 = vsel %vm643, 0, %v642
        %v645 = vsub.s32 32, %v644
        %v646 = vshll.u32 %v637, %v644
        %v647 = vshrl.u32 %v629, %v645
        %v648 = vor.u32 %v646, %v647
        %v649 = vsub.s32 4294967266, %v644
        %v650 = vadd.s32 %v649, 127
        %v651 = vshll.u32 %v650, 23
        %v652 = vor.u32 4788187, %v651
        %v653 = vand.u32 2147483647, %v652
        %v655 = vcvt.s32.f32 %v648
        %v656 = vmul.f32 %v655, %v653
        %v657 = vxor.u32 %v656, 2147483648
        %v658 = vsel %vm575, %v657, %v656
        %v659 = vsub.s32 4, %v635
        %v660 = vsel %vm575, %v659, %v635
        %v661 = vsel %vm574, %v363, %v658
        %v662 = vsel %vm574, 0, %v660
        %v663 = vcosq.f32.pop %v661
        %v664 = vsinq.f32.pop %v661
        %vm665 = vweird.f32 %v363
        %v666 = vadd.s32 %v662, 3
        %v667 = vand.u32 %v666, 3
        %vm668 = vcmp.lt.s32.totalorder %v667, 2
        %vm669 = vcmp.eq.s32.totalorder %v667, 0
        %v670 = vxor.u32 %v664, 2147483648
        %v671 = vsel %vm669, %v663, %v670
        %vm672 = vcmp.eq.s32.totalorder %v667, 2
        %v673 = vxor.u32 %v663, 2147483648
        %v674 = vsel %vm672, %v673, %v664
        %v675 = vsel %vm668, %v671, %v674
        %v676 = vsel %vm665, nan, %v675
        %v677 = vand.u32 2147483647, %v364
        %vm678 = vcmp.le.f32.partialorder %v677, 0.7853982
        %vm679 = vcmp.lt.s32.totalorder %v364, 0
        %v680 = vand.u32 %v364, 2139095040
        %v681 = vshrl.u32 %v680, 23
        %v682 = vsub.s32 %v681, 127
        %v683 = vand.u32 2147483647, %v364
        %v684 = vand.u32 %v683, 8388607
        %v685 = vor.u32 %v684, 8388608
        %v686 = vsub.s32 0, %v685
        %v687 = vadd.s32 %v682, 1
        %vm688 = vcmp.gt.s32.totalorder %v687, 0
        %v689 = vsel %vm688, %v687, 0
        %v690 = vshrl.u32 %v689, 5
        %v691 = vand.u32 %v689, 31
        %v692 = vsub.s32 32, %v691
        %v693 = vshrl.u32 683565275, %v692
        %v694 = vshll.u32 683565275, %v691
        %v695 = vshrl.u32 2475754826, %v692
        %v696 = vor.u32 %v694, %v695
        %v697 = vshll.u32 2475754826, %v691
        %v698 = vshrl.u32 2131351028, %v692
        %v699 = vor.u32 %v697, %v698
        %v700 = vshll.u32 2131351028, %v691
        %v701 = vshrl.u32 2102212464, %v692
        %v702 = vor.u32 %v700, %v701
        %v703 = vshll.u32 2102212464, %v691
        %v704 = vshrl.u32 920167782, %v692
        %v705 = vor.u32 %v703, %v704
        %v706 = vshll.u32 920167782, %v691
        %v707 = vshrl.u32 1326507024, %v692
        %v708 = vor.u32 %v706, %v707
        %vm709 = vcmp.lt.s32.totalorder %v690, 1
        %vm710 = vcmp.lt.s32.totalorder %v690, 2
        %vm711 = vcmp.lt.s32.totalorder %v690, 3
        %vm712 = vcmp.lt.s32.totalorder %v690, 4
        %v713 = vsel %vm709, %v693, %v696
        %v714 = vsel %vm712, %v702, 2102212464
        %v715 = vsel %vm711, %v699, %v714
        %v716 = vsel %vm710, %v713, %v715
        %v717 = vsel %vm709, %v696, %v699
        %v718 = vsel %vm712, %v705, 920167782
        %v719 = vsel %vm711, %v702, %v718
        %v720 = vsel %vm710, %v717, %v719
        %v721 = vsel %vm709, %v699, %v702
        %v722 = vsel %vm712, %v708, 1326507024
        %v723 = vsel %vm711, %v705, %v722
        %v724 = vsel %vm710, %v721, %v723
        %v725 = vshll.u32 %v685, 8
        %v726 = vmul.u32.u64.compose %v725, %v724
        %v727 = vextract.low.u32 %v726
        %v728 = vextract.high.u32 %v726
        %v729 = vmul.u32.u64.compose %v725, %v720
        %v730 = vextract.low.u32 %v729
        %v731 = vextract.high.u32 %v729
        %v732 = vmul.u32 %v725, %v716
        %v733 = vadd.s32 %v728, %v730
        %vm734 = vc.u32 %v728, %v730
        %v735 = vadd.s32 %v731, 1
        %v736 = vsel %vm734, %v735, %v731
        %v737 = vadd.s32 %v732, %v736
        %v738 = vadd.s32 %v737, 536870912
        %v739 = vshrl.u32 %v738, 30
        %v740 = vshll.u32 %v739, 30
        %v741 = vsub.s32 %v737, %v740
        %vm742 = vcmp.lt.s32.totalorder %v741, 0
        %v743 = vsub.s32 0, %v741
        %v744 = vsel %vm742, %v743, %v741
        %v745 = vclz %v744
        %v746 = vsub.s32 %v745, 2
        %vm747 = vcmp.gt.s32.totalorder 0, %v746
        %v748 = vsel %vm747, 0, %v746
        %v749 = vsub.s32 32, %v748
        %v750 = vshll.u32 %v741, %v748
        %v751 = vshrl.u32 %v733, %v749
        %v752 = vor.u32 %v750, %v751
        %v753 = vsub.s32 4294967266, %v748
        %v754 = vadd.s32 %v753, 127
        %v755 = vshll.u32 %v754, 23
        %v756 = vor.u32 4788187, %v755
        %v757 = vand.u32 2147483647, %v756
        %v759 = vcvt.s32.f32 %v752
        %v760 = vmul.f32 %v759, %v757
        %v761 = vxor.u32 %v760, 2147483648
        %v762 = vsel %vm679, %v761, %v760
        %v763 = vsub.s32 4, %v739
        %v764 = vsel %vm679, %v763, %v739
        %v765 = vsel %vm678, %v364, %v762
        %v766 = vsel %vm678, 0, %v764
        %v767 = vcosq.f32.pop %v765
        %v768 = vsinq.f32.pop %v765
        %vm769 = vweird.f32 %v364
        %v770 = vadd.s32 %v766, 3
        %v771 = vand.u32 %v770, 3
        %vm772 = vcmp.lt.s32.totalorder %v771, 2
        %vm773 = vcmp.eq.s32.totalorder %v771, 0
        %v774 = vxor.u32 %v768, 2147483648
        %v775 = vsel %vm773, %v767, %v774
        %vm776 = vcmp.eq.s32.totalorder %v771, 2
        %v777 = vxor.u32 %v767, 2147483648
        %v778 = vsel %vm776, %v777, %v768
        %v779 = vsel %vm772, %v775, %v778
        %v780 = vsel %vm769, nan, %v779
        %v781 = vpack.c.bf16 %v572, %v468
        %v782 = vpack.c.bf16 %v780, %v676
        %783 = vset.pattern.permute.xlu0 3
        %784 = vperm.xlu0 %783, %v285
        %v785 = vpop.permute.xlu0 %784
        %787 = vset.pattern.permute.xlu0 3
        %788 = vperm.xlu0 %787, %v286
        %v789 = vpop.permute.xlu0 %788
        %791 = vset.pattern.permute.xlu0 3
        %792 = vperm.xlu0 %791, %v287
        %v793 = vpop.permute.xlu0 %792
        %795 = vset.pattern.permute.xlu0 3
        %796 = vperm.xlu0 %795, %v288
        %v797 = vpop.permute.xlu0 %796
        %v799 = vmul.f32 %v785, %v312
        %v800 = vmul.f32 %v789, %v312
        %v801 = vmul.f32 %v793, %v312
        %v802 = vmul.f32 %v797, %v312
        %803 = vset.pattern.permute.xlu0 4
        %804 = vperm.xlu0 %803, %v285
        %v805 = vpop.permute.xlu0 %804
        %807 = vset.pattern.permute.xlu0 4
        %808 = vperm.xlu0 %807, %v286
        %v809 = vpop.permute.xlu0 %808
        %811 = vset.pattern.permute.xlu0 4
        %812 = vperm.xlu0 %811, %v287
        %v813 = vpop.permute.xlu0 %812
        %815 = vset.pattern.permute.xlu0 4
        %816 = vperm.xlu0 %815, %v288
        %v817 = vpop.permute.xlu0 %816
        %v819 = vmul.f32 %v805, %v336
        %v820 = vmul.f32 %v809, %v336
        %v821 = vmul.f32 %v813, %v336
        %v822 = vmul.f32 %v817, %v336
        %v823 = vadd.f32 %v799, %v819
        %v824 = vadd.f32 %v800, %v820
        %v825 = vadd.f32 %v801, %v821
        %v826 = vadd.f32 %v802, %v822
        %827 = vset.pattern.permute.xlu0 5
        %828 = vperm.xlu0 %827, %v285
        %v829 = vpop.permute.xlu0 %828
        %831 = vset.pattern.permute.xlu0 5
        %832 = vperm.xlu0 %831, %v286
        %v833 = vpop.permute.xlu0 %832
        %835 = vset.pattern.permute.xlu0 5
        %836 = vperm.xlu0 %835, %v287
        %v837 = vpop.permute.xlu0 %836
        %839 = vset.pattern.permute.xlu0 5
        %840 = vperm.xlu0 %839, %v288
        %v841 = vpop.permute.xlu0 %840
        %v843 = vmul.f32 %v829, %v312
        %v844 = vmul.f32 %v833, %v312
        %v845 = vmul.f32 %v837, %v312
        %v846 = vmul.f32 %v841, %v312
        %847 = vset.pattern.permute.xlu0 6
        %848 = vperm.xlu0 %847, %v285
        %v849 = vpop.permute.xlu0 %848
        %851 = vset.pattern.permute.xlu0 6
        %852 = vperm.xlu0 %851, %v286
        %v853 = vpop.permute.xlu0 %852
        %855 = vset.pattern.permute.xlu0 6
        %856 = vperm.xlu0 %855, %v287
        %v857 = vpop.permute.xlu0 %856
        %859 = vset.pattern.permute.xlu0 6
        %860 = vperm.xlu0 %859, %v288
        %v861 = vpop.permute.xlu0 %860
        %v863 = vmul.f32 %v849, %v336
        %v864 = vmul.f32 %v853, %v336
        %v865 = vmul.f32 %v857, %v336
        %v866 = vmul.f32 %v861, %v336
        %v867 = vadd.f32 %v843, %v863
        %v868 = vadd.f32 %v844, %v864
        %v869 = vadd.f32 %v845, %v865
        %v870 = vadd.f32 %v846, %v866
        %v871 = vld [vmem:[%s1] sm:$0xf]
        %v872 = vld [vmem:[%s1 + $0x4] sm:$0xf]
        %v873 = vld [vmem:[%s1 + $0x8] sm:$0xf]
        %v874 = vld [vmem:[%s1 + $0xc] sm:$0xf]
        %v879 = vunpack.c.l.b16 %v871
        %v880 = vunpack.c.l.b16 %v872
        %v881 = vunpack.c.l.b16 %v873
        %v882 = vunpack.c.l.b16 %v874
        %v883 = vpack.c.b16 %v880, %v879
        %v884 = vpack.c.b16 %v882, %v881
        %vm885 = vcmask 261120
        %v887 = vsel %vm885, %v883, 0
        %v890 = vsel %vm885, %v884, 0
        %892 = vmatprep.subr.bf16.mxu0 0
        %893 = vmatpush1.bf16.msra.mxu0 %v781
        %894 = vmatprep.subr.bf16.mxu0 0
        %895 = vmatpush1.bf16.msra.mxu0 %v782
        %896 = vmatprep.subr.bf16.mxu0 0
        %897 = vmatpush1.bf16.msra.mxu0 0
        %898 = vmatprep.subr.bf16.mxu0 0
        %899 = vmatpush1.bf16.msra.mxu0 0
        %900 = vmatprep.subr.bf16.mxu0 0
        %901 = vmatpush1.bf16.msra.mxu0 0
        %902 = vmatprep.subr.bf16.mxu0 0
        %903 = vmatpush1.bf16.msra.mxu0 0
        %904 = vmatprep.subr.bf16.mxu0 0
        %905 = vmatpush1.bf16.msra.mxu0 0
        %906 = vmatprep.subr.bf16.mxu0 0
        %907 = vmatpush1.bf16.msra.mxu0 0
        %908 = vmatprep.subr.bf16.mxu0 0
        %909 = vmatpush1.bf16.msra.mxu0 0
        %910 = vmatprep.subr.bf16.mxu0 0
        %911 = vmatpush1.bf16.msra.mxu0 0
        %912 = vmatprep.subr.bf16.mxu0 0
        %913 = vmatpush1.bf16.msra.mxu0 0
        %914 = vmatprep.subr.bf16.mxu0 0
        %915 = vmatpush1.bf16.msra.mxu0 0
        %916 = vmatprep.subr.bf16.mxu0 0
        %917 = vmatpush1.bf16.msra.mxu0 0
        %918 = vmatprep.subr.bf16.mxu0 0
        %919 = vmatpush1.bf16.msra.mxu0 0
        %920 = vmatprep.subr.bf16.mxu0 0
        %921 = vmatpush1.bf16.msra.mxu0 0
        %922 = vmatprep.subr.bf16.mxu0 0
        %923 = vmatpush1.bf16.msra.mxu0 0
        %924 = vmatprep.mubr.bf16.mxu0 0
        %925 = vmatmul.mubr.bf16.gmra.mrb[0].mxu0 %v887
        %v926 = vpop.f32.mrb[0].mxu0
        %v927 = vadd.f32 %v823, %v926
        %v928 = vpop.f32.mrb[0].mxu0
        %v929 = vpop.f32.mrb[0].mxu0
        %v930 = vadd.f32 %v824, %v929
        %v931 = vpop.f32.mrb[0].mxu0
        %932 = vmatprep.mubr.bf16.mxu0 0
        %933 = vmatmul.mubr.bf16.gmra.mrb[0].mxu0 %v890
        %v934 = vpop.f32.mrb[0].mxu0
        %v935 = vadd.f32 %v825, %v934
        %v936 = vpop.f32.mrb[0].mxu0
        %v937 = vpop.f32.mrb[0].mxu0
        %v938 = vadd.f32 %v826, %v937
        %v939 = vpop.f32.mrb[0].mxu0
        %940 = vdwg.mxu0
        %941 = vset.pattern.permute.xlu0 7
        %942 = vperm.xlu0 %941, %v285
        %v943 = vpop.permute.xlu0 %942
        %945 = vset.pattern.permute.xlu0 7
        %946 = vperm.xlu0 %945, %v286
        %v947 = vpop.permute.xlu0 %946
        %949 = vset.pattern.permute.xlu0 7
        %950 = vperm.xlu0 %949, %v287
        %v951 = vpop.permute.xlu0 %950
        %953 = vset.pattern.permute.xlu0 7
        %954 = vperm.xlu0 %953, %v288
        %v955 = vpop.permute.xlu0 %954
        %v957 = vadd.f32 %v927, %v943
        %v958 = vadd.f32 %v930, %v947
        %v959 = vadd.f32 %v935, %v951
        %v960 = vadd.f32 %v938, %v955
        %v961 = vmax.f32 %v957, 0.0
        %v962 = vmax.f32 %v958, 0.0
        %v963 = vmax.f32 %v959, 0.0
        %v964 = vmax.f32 %v960, 0.0
        %s965 = scalar_lea.vmem %s1, 16
        %v966 = vld [vmem:[%s965] sm:$0xf]
        %v967 = vld [vmem:[%s965 + $0x4] sm:$0xf]
        %v968 = vld [vmem:[%s965 + $0x8] sm:$0xf]
        %v969 = vld [vmem:[%s965 + $0xc] sm:$0xf]
        %v970 = vpack.c.bf16 %v962, %v961
        %v971 = vpack.c.bf16 %v964, %v963
        %972 = vset.pattern.permute.xlu0 8
        %973 = vperm.xlu0 %972, %v285
        %v974 = vpop.permute.xlu0 %973
        %976 = vset.pattern.permute.xlu0 8
        %977 = vperm.xlu0 %976, %v286
        %v978 = vpop.permute.xlu0 %977
        %980 = vset.pattern.permute.xlu0 8
        %981 = vperm.xlu0 %980, %v287
        %v982 = vpop.permute.xlu0 %981
        %984 = vset.pattern.permute.xlu0 8
        %985 = vperm.xlu0 %984, %v288
        %v986 = vpop.permute.xlu0 %985
        %v992 = vunpack.c.l.b16 %v966
        %v993 = vunpack.c.l.b16 %v967
        %v994 = vunpack.c.l.b16 %v968
        %v995 = vunpack.c.l.b16 %v969
        %v996 = vpack.c.b16 %v993, %v992
        %v997 = vpack.c.b16 %v995, %v994
        %v999 = vsel %vm885, %v996, 0
        %v1002 = vsel %vm885, %v997, 0
        %1004 = vmatprep.subr.bf16.mxu0 0
        %1005 = vmatpush1.bf16.msra.mxu0 %v970
        %1006 = vmatprep.subr.bf16.mxu0 0
        %1007 = vmatpush1.bf16.msra.mxu0 %v971
        %1008 = vmatprep.subr.bf16.mxu0 0
        %1009 = vmatpush1.bf16.msra.mxu0 0
        %1010 = vmatprep.subr.bf16.mxu0 0
        %1011 = vmatpush1.bf16.msra.mxu0 0
        %1012 = vmatprep.subr.bf16.mxu0 0
        %1013 = vmatpush1.bf16.msra.mxu0 0
        %1014 = vmatprep.subr.bf16.mxu0 0
        %1015 = vmatpush1.bf16.msra.mxu0 0
        %1016 = vmatprep.subr.bf16.mxu0 0
        %1017 = vmatpush1.bf16.msra.mxu0 0
        %1018 = vmatprep.subr.bf16.mxu0 0
        %1019 = vmatpush1.bf16.msra.mxu0 0
        %1020 = vmatprep.subr.bf16.mxu0 0
        %1021 = vmatpush1.bf16.msra.mxu0 0
        %1022 = vmatprep.subr.bf16.mxu0 0
        %1023 = vmatpush1.bf16.msra.mxu0 0
        %1024 = vmatprep.subr.bf16.mxu0 0
        %1025 = vmatpush1.bf16.msra.mxu0 0
        %1026 = vmatprep.subr.bf16.mxu0 0
        %1027 = vmatpush1.bf16.msra.mxu0 0
        %1028 = vmatprep.subr.bf16.mxu0 0
        %1029 = vmatpush1.bf16.msra.mxu0 0
        %1030 = vmatprep.subr.bf16.mxu0 0
        %1031 = vmatpush1.bf16.msra.mxu0 0
        %1032 = vmatprep.subr.bf16.mxu0 0
        %1033 = vmatpush1.bf16.msra.mxu0 0
        %1034 = vmatprep.subr.bf16.mxu0 0
        %1035 = vmatpush1.bf16.msra.mxu0 0
        %1036 = vmatprep.mubr.bf16.mxu0 0
        %1037 = vmatmul.mubr.bf16.gmra.mrb[0].mxu0 %v999
        %v1038 = vpop.f32.mrb[0].mxu0
        %v1039 = vadd.f32 %v974, %v1038
        %v1040 = vpop.f32.mrb[0].mxu0
        %v1041 = vpop.f32.mrb[0].mxu0
        %v1042 = vadd.f32 %v978, %v1041
        %v1043 = vpop.f32.mrb[0].mxu0
        %1044 = vmatprep.mubr.bf16.mxu0 0
        %1045 = vmatmul.mubr.bf16.gmra.mrb[0].mxu0 %v1002
        %v1046 = vpop.f32.mrb[0].mxu0
        %v1047 = vadd.f32 %v982, %v1046
        %v1048 = vpop.f32.mrb[0].mxu0
        %v1049 = vpop.f32.mrb[0].mxu0
        %v1050 = vadd.f32 %v986, %v1049
        %v1051 = vpop.f32.mrb[0].mxu0
        %1052 = vdwg.mxu0
        %v1053 = vmax.f32 %v1039, 0.0
        %v1054 = vmax.f32 %v1042, 0.0
        %v1055 = vmax.f32 %v1047, 0.0
        %v1056 = vmax.f32 %v1050, 0.0
        %v1057 = vpack.c.bf16 %v1054, %v1053
        %v1058 = vpack.c.bf16 %v1056, %v1055
        %v1059 = vld [vmem:[#allocation5] sm:$0xf]
        %v1060 = vld [vmem:[#allocation5 + $0x4] sm:$0xf]
        %v1061 = vld [vmem:[#allocation5 + $0x8] sm:$0xf]
        %v1062 = vld [vmem:[#allocation5 + $0xc] sm:$0xf]
        %v1067 = vunpack.c.l.b16 %v1059
        %v1068 = vunpack.c.l.b16 %v1060
        %v1069 = vunpack.c.l.b16 %v1061
        %v1070 = vunpack.c.l.b16 %v1062
        %v1071 = vpack.c.b16 %v1068, %v1067
        %v1072 = vpack.c.b16 %v1070, %v1069
        %vm1073 = vcmask 523264
        %v1075 = vsel %vm1073, %v1071, 0
        %v1078 = vsel %vm1073, %v1072, 0
        %1080 = vmatprep.subr.bf16.mxu0 0
        %1081 = vmatpush1.bf16.msra.mxu0 %v1057
        %1082 = vmatprep.subr.bf16.mxu0 0
        %1083 = vmatpush1.bf16.msra.mxu0 %v1058
        %1084 = vmatprep.subr.bf16.mxu0 0
        %1085 = vmatpush1.bf16.msra.mxu0 %v781
        %1086 = vmatprep.subr.bf16.mxu0 0
        %1087 = vmatpush1.bf16.msra.mxu0 %v782
        %1088 = vmatprep.subr.bf16.mxu0 0
        %1089 = vmatpush1.bf16.msra.mxu0 0
        %1090 = vmatprep.subr.bf16.mxu0 0
        %1091 = vmatpush1.bf16.msra.mxu0 0
        %1092 = vmatprep.subr.bf16.mxu0 0
        %1093 = vmatpush1.bf16.msra.mxu0 0
        %1094 = vmatprep.subr.bf16.mxu0 0
        %1095 = vmatpush1.bf16.msra.mxu0 0
        %1096 = vmatprep.subr.bf16.mxu0 0
        %1097 = vmatpush1.bf16.msra.mxu0 0
        %1098 = vmatprep.subr.bf16.mxu0 0
        %1099 = vmatpush1.bf16.msra.mxu0 0
        %1100 = vmatprep.subr.bf16.mxu0 0
        %1101 = vmatpush1.bf16.msra.mxu0 0
        %1102 = vmatprep.subr.bf16.mxu0 0
        %1103 = vmatpush1.bf16.msra.mxu0 0
        %1104 = vmatprep.subr.bf16.mxu0 0
        %1105 = vmatpush1.bf16.msra.mxu0 0
        %1106 = vmatprep.subr.bf16.mxu0 0
        %1107 = vmatpush1.bf16.msra.mxu0 0
        %1108 = vmatprep.subr.bf16.mxu0 0
        %1109 = vmatpush1.bf16.msra.mxu0 0
        %1110 = vmatprep.subr.bf16.mxu0 0
        %1111 = vmatpush1.bf16.msra.mxu0 0
        %1112 = vmatprep.mubr.bf16.mxu0 0
        %1113 = vmatmul.mubr.bf16.gmra.mrb[0].mxu0 %v1075
        %v1114 = vpop.f32.mrb[0].mxu0
        %v1115 = vadd.f32 %v867, %v1114
        %v1116 = vpop.f32.mrb[0].mxu0
        %v1117 = vpop.f32.mrb[0].mxu0
        %v1118 = vadd.f32 %v868, %v1117
        %v1119 = vpop.f32.mrb[0].mxu0
        %1120 = vmatprep.mubr.bf16.mxu0 0
        %1121 = vmatmul.mubr.bf16.gmra.mrb[0].mxu0 %v1078
        %v1122 = vpop.f32.mrb[0].mxu0
        %v1123 = vadd.f32 %v869, %v1122
        %v1124 = vpop.f32.mrb[0].mxu0
        %v1125 = vpop.f32.mrb[0].mxu0
        %v1126 = vadd.f32 %v870, %v1125
        %v1127 = vpop.f32.mrb[0].mxu0
        %1128 = vdwg.mxu0
        %1129 = vset.pattern.permute.xlu0 9
        %1130 = vperm.xlu0 %1129, %v285
        %v1131 = vpop.permute.xlu0 %1130
        %1133 = vset.pattern.permute.xlu0 9
        %1134 = vperm.xlu0 %1133, %v286
        %v1135 = vpop.permute.xlu0 %1134
        %1137 = vset.pattern.permute.xlu0 9
        %1138 = vperm.xlu0 %1137, %v287
        %v1139 = vpop.permute.xlu0 %1138
        %1141 = vset.pattern.permute.xlu0 9
        %1142 = vperm.xlu0 %1141, %v288
        %v1143 = vpop.permute.xlu0 %1142
        %v1145 = vadd.f32 %v1115, %v1131
        %v1146 = vadd.f32 %v1118, %v1135
        %v1147 = vadd.f32 %v1123, %v1139
        %v1148 = vadd.f32 %v1126, %v1143
        %v1149 = vmax.f32 %v1145, 0.0
        %v1150 = vmax.f32 %v1146, 0.0
        %v1151 = vmax.f32 %v1147, 0.0
        %v1152 = vmax.f32 %v1148, 0.0
        %s1153 = scalar_lea.vmem %s1, 32
        %v1154 = vld [vmem:[%s1153] sm:$0xf]
        %v1155 = vld [vmem:[%s1153 + $0x4] sm:$0xf]
        %v1156 = vld [vmem:[%s1153 + $0x8] sm:$0xf]
        %v1157 = vld [vmem:[%s1153 + $0xc] sm:$0xf]
        %v1158 = vpack.c.bf16 %v1150, %v1149
        %v1159 = vpack.c.bf16 %v1152, %v1151
        %1160 = vset.pattern.permute.xlu0 10
        %1161 = vperm.xlu0 %1160, %v285
        %v1162 = vpop.permute.xlu0 %1161
        %1164 = vset.pattern.permute.xlu0 10
        %1165 = vperm.xlu0 %1164, %v286
        %v1166 = vpop.permute.xlu0 %1165
        %1168 = vset.pattern.permute.xlu0 10
        %1169 = vperm.xlu0 %1168, %v287
        %v1170 = vpop.permute.xlu0 %1169
        %1172 = vset.pattern.permute.xlu0 10
        %1173 = vperm.xlu0 %1172, %v288
        %v1174 = vpop.permute.xlu0 %1173
        %v1180 = vunpack.c.l.b16 %v1154
        %v1181 = vunpack.c.l.b16 %v1155
        %v1182 = vunpack.c.l.b16 %v1156
        %v1183 = vunpack.c.l.b16 %v1157
        %v1184 = vpack.c.b16 %v1181, %v1180
        %v1185 = vpack.c.b16 %v1183, %v1182
        %v1187 = vsel %vm885, %v1184, 0
        %v1190 = vsel %vm885, %v1185, 0
        %1192 = vmatprep.subr.bf16.mxu0 0
        %1193 = vmatpush1.bf16.msra.mxu0 %v1158
        %1194 = vmatprep.subr.bf16.mxu0 0
        %1195 = vmatpush1.bf16.msra.mxu0 %v1159
        %1196 = vmatprep.subr.bf16.mxu0 0
        %1197 = vmatpush1.bf16.msra.mxu0 0
        %1198 = vmatprep.subr.bf16.mxu0 0
        %1199 = vmatpush1.bf16.msra.mxu0 0
        %1200 = vmatprep.subr.bf16.mxu0 0
        %1201 = vmatpush1.bf16.msra.mxu0 0
        %1202 = vmatprep.subr.bf16.mxu0 0
        %1203 = vmatpush1.bf16.msra.mxu0 0
        %1204 = vmatprep.subr.bf16.mxu0 0
        %1205 = vmatpush1.bf16.msra.mxu0 0
        %1206 = vmatprep.subr.bf16.mxu0 0
        %1207 = vmatpush1.bf16.msra.mxu0 0
        %1208 = vmatprep.subr.bf16.mxu0 0
        %1209 = vmatpush1.bf16.msra.mxu0 0
        %1210 = vmatprep.subr.bf16.mxu0 0
        %1211 = vmatpush1.bf16.msra.mxu0 0
        %1212 = vmatprep.subr.bf16.mxu0 0
        %1213 = vmatpush1.bf16.msra.mxu0 0
        %1214 = vmatprep.subr.bf16.mxu0 0
        %1215 = vmatpush1.bf16.msra.mxu0 0
        %1216 = vmatprep.subr.bf16.mxu0 0
        %1217 = vmatpush1.bf16.msra.mxu0 0
        %1218 = vmatprep.subr.bf16.mxu0 0
        %1219 = vmatpush1.bf16.msra.mxu0 0
        %1220 = vmatprep.subr.bf16.mxu0 0
        %1221 = vmatpush1.bf16.msra.mxu0 0
        %1222 = vmatprep.subr.bf16.mxu0 0
        %1223 = vmatpush1.bf16.msra.mxu0 0
        %1224 = vmatprep.mubr.bf16.mxu0 0
        %1225 = vmatmul.mubr.bf16.gmra.mrb[0].mxu0 %v1187
        %v1226 = vpop.f32.mrb[0].mxu0
        %v1227 = vadd.f32 %v1162, %v1226
        %v1228 = vpop.f32.mrb[0].mxu0
        %v1229 = vpop.f32.mrb[0].mxu0
        %v1230 = vadd.f32 %v1166, %v1229
        %v1231 = vpop.f32.mrb[0].mxu0
        %1232 = vmatprep.mubr.bf16.mxu0 0
        %1233 = vmatmul.mubr.bf16.gmra.mrb[0].mxu0 %v1190
        %v1234 = vpop.f32.mrb[0].mxu0
        %v1235 = vadd.f32 %v1170, %v1234
        %v1236 = vpop.f32.mrb[0].mxu0
        %v1237 = vpop.f32.mrb[0].mxu0
        %v1238 = vadd.f32 %v1174, %v1237
        %v1239 = vpop.f32.mrb[0].mxu0
        %1240 = vdwg.mxu0
        %v1241 = vmax.f32 %v1227, 0.0
        %v1242 = vmax.f32 %v1230, 0.0
        %v1243 = vmax.f32 %v1235, 0.0
        %v1244 = vmax.f32 %v1238, 0.0
        %v1245 = vld [vmem:[%s3] sm:$0x3]
        %v1246 = vpack.c.bf16 %v1242, %v1241
        %v1247 = vpack.c.bf16 %v1244, %v1243
        %v1248 = vld [vmem:[%s5] sm:$0x7]
        %1250 = vset.pattern.permute.xlu0 0
        %1251 = vperm.xlu0 %1250, %v1248
        %v1252 = vpop.permute.xlu0 %1251
        %v1255 = vsel %vm885, %v1245, 0
        %1257 = vmatprep.subr.bf16.mxu0 0
        %1258 = vmatpush1.bf16.msra.mxu0 %v1246
        %1259 = vmatprep.subr.bf16.mxu0 0
        %1260 = vmatpush1.bf16.msra.mxu0 %v1247
        %1261 = vmatprep.subr.bf16.mxu0 0
        %1262 = vmatpush1.bf16.msra.mxu0 0
        %1263 = vmatprep.subr.bf16.mxu0 0
        %1264 = vmatpush1.bf16.msra.mxu0 0
        %1265 = vmatprep.subr.bf16.mxu0 0
        %1266 = vmatpush1.bf16.msra.mxu0 0
        %1267 = vmatprep.subr.bf16.mxu0 0
        %1268 = vmatpush1.bf16.msra.mxu0 0
        %1269 = vmatprep.subr.bf16.mxu0 0
        %1270 = vmatpush1.bf16.msra.mxu0 0
        %1271 = vmatprep.subr.bf16.mxu0 0
        %1272 = vmatpush1.bf16.msra.mxu0 0
        %1273 = vmatprep.subr.bf16.mxu0 0
        %1274 = vmatpush1.bf16.msra.mxu0 0
        %1275 = vmatprep.subr.bf16.mxu0 0
        %1276 = vmatpush1.bf16.msra.mxu0 0
        %1277 = vmatprep.subr.bf16.mxu0 0
        %1278 = vmatpush1.bf16.msra.mxu0 0
        %1279 = vmatprep.subr.bf16.mxu0 0
        %1280 = vmatpush1.bf16.msra.mxu0 0
        %1281 = vmatprep.subr.bf16.mxu0 0
        %1282 = vmatpush1.bf16.msra.mxu0 0
        %1283 = vmatprep.subr.bf16.mxu0 0
        %1284 = vmatpush1.bf16.msra.mxu0 0
        %1285 = vmatprep.subr.bf16.mxu0 0
        %1286 = vmatpush1.bf16.msra.mxu0 0
        %1287 = vmatprep.subr.bf16.mxu0 0
        %1288 = vmatpush1.bf16.msra.mxu0 0
        %1289 = vmatprep.mubr.bf16.mxu0 0
        %1290 = vmatmul.mubr.bf16.gmra.mrb[0].mxu0 %v1255
        %v1291 = vpop.f32.mrb[0].mxu0
        %v1292 = vadd.f32 %v1252, %v1291
        %v1293 = vpop.f32.mrb[0].mxu0
        %v1294 = vpop.f32.mrb[0].mxu0
        %v1295 = vpop.f32.mrb[0].mxu0
        %1296 = vdwg.mxu0
        %v1297 = vxor.u32 %v1292, 2147483648
        %v1298 = vmul.f32 %v1297, 1.442695
        %v1299 = vpow.pop %v1298
        %v1300 = vadd.f32 %v1299, 1.0
        %v1301 = vrcp.pop %v1300
        %v1302 = vmul.f32 1.0, %v1301
        %1303 = vst [vmem:[%s281] sm:$0x7] %v1302
        %s1304 = sand.u32 %s163, 1
        %s1305 = scalar_lea.sflag [#allocation4], %s1304
        %s1306 = sand.u32 %s163, 1
        %s1307 = smul.addr %s1306, 4
        %s1308 = scalar_lea.vmem [#allocation7], %s1307
        // Predicated region
        $region53: #{tpu_custom_call.1} parent=43 // pred_check
          %p1309 = pneg %p173
        $region54: #{tpu_custom_call.1} parent=43 // pred_check_branch
          %1311 = sbr.rel (%p1309) target = $region56
        $region55: #{tpu_custom_call.1} parent=43 // pred_region
          %s1313 = ssub.s32 64, 64
          %1314 = vsyncadd %s1305, %s1313
          %s1315 = smul.addr %s24, 64
          %s1316 = scalar_lea.hbm %s6, %s1315
          %s1318 = sshll.u32 %s1308, 4
          %s1319 = int_to_ptr.vmem [resolvable:$true] %s1318
          %1321 = dma.vmem_to_hbm [thread:$0]  %s1319, 64, %s1316, %s1305
        $region56: #{tpu_custom_call.1} parent=43 // pred_fallthru
          _
      $region44: #{tpu_custom_call.1} parent=5 // pred_fallthru
        _
      %p1322 = scmp.le.s32.totalorder 2, %s19
      // Predicated region
      $region57: #{tpu_custom_call.1} parent=5 // pred_check
        %p1323 = pneg %p1322
      $region58: #{tpu_custom_call.1} parent=5 // pred_check_branch
        %1325 = sbr.rel (%p1323) target = $region60
      $region59: #{tpu_custom_call.1} parent=5 // pred_region
        %s1326 = ssub.s32 %s19, 2
        // Predicated region
        $region61: #{tpu_custom_call.1} parent=59 // pred_check
          %p1327 = pneg %p179
        $region62: #{tpu_custom_call.1} parent=59 // pred_check_branch
          %1329 = sbr.rel (%p1327) target = $region64
        $region63: #{tpu_custom_call.1} parent=59 // pred_region
          %s1330 = sand.u32 %s164, 1
          %s1331 = scalar_lea.sflag [#allocation4], %s1330
          %s1332 = sand.u32 %s164, 1
          %s1333 = smul.addr %s1332, 4
          %s1334 = scalar_lea.vmem [#allocation7], %s1333
          %1335 = dma.done %s1331, 64
        $region64: #{tpu_custom_call.1} parent=59 // pred_fallthru
          _
      $region60: #{tpu_custom_call.1} parent=5 // pred_fallthru
        _
    $region6: #{tpu_custom_call.1} parent=1 // loop_footer
      %s23 = sadd.s32 1, %s19
    $region7: #{tpu_custom_call.1} parent=1 // loop_footer_branch
      %18 = sbr.rel target = $region3
    $region8: #{tpu_custom_call.1} parent=1 // loop_exit
      _
    %1336 = vsyncpa [#allocation3], 1
    %s1337 = scalar_lea.sflag [#allocation3], 1
    %1338 = vsyncpa %s1337, 1
    %1339 = vsyncpa [#allocation6], 1
    %1340 = vsyncpa [#allocation4], 1
    %s1341 = scalar_lea.sflag [#allocation4], 1
    %1342 = vsyncpa %s1341, 1

</llo_original>
